<compile_context>
chip_gen: v5e
topology: v5e:2x2
jax: 0.10.0
libtpu: 0.0.40
codegen_flags: <defaults>
</compile_context>

<pallas_src>
import functools

import jax
import jax.numpy as jnp
import numpy as np
from jax.experimental import pallas as pl
from jax.experimental.pallas import tpu as pltpu


# -----------------------------------------------------------------------------
# Kernel
# -----------------------------------------------------------------------------
def generator_kernel(B, x_ref, wih0_ref, whh0_ref, b0_ref,
                     wih1_ref, whh1_ref, b1_ref, wlin_ref, blin_ref,
                     out_ref,
                     h0_scr, c0_scr, h1_scr, c1_scr,
                     gates0_scr, h1seq_scr):
    """One S-chunk of a 2-layer LSTM + Linear.

    x_ref   : (S_chunk*B, D)  time-major flattened input chunk        VMEM
    wih0    : (D, 4H)  whh0: (H, 4H)  b0: (1, 4H)                     layer 0
    wih1    : (H, 4H)  whh1: (H, 4H)  b1: (1, 4H)                     layer 1
    wlin    : (H, O)   blin: (1, O)                                   linear
    out_ref : (S_chunk*B, O)
    h*/c*   : (B, H) persistent carries across S-chunks (grid axis 0)
    gates0_scr : (S_chunk*B, 4H)  hoisted layer-0 input projection
    h1seq_scr  : (S_chunk*B, H)   per-step layer-1 hidden states
    Gate order follows PyTorch nn.LSTM: [i, f, g, o] along the 4H axis.
    """
    rows, _ = x_ref.shape
    H = whh0_ref.shape[0]
    S_chunk = rows // B
    si = pl.program_id(0)

    # ---- first chunk: zero-init the recurrent state ------------------------
    @pl.when(si == 0)
    def _init():
        h0_scr[...] = jnp.zeros_like(h0_scr)
        c0_scr[...] = jnp.zeros_like(c0_scr)
        h1_scr[...] = jnp.zeros_like(h1_scr)
        c1_scr[...] = jnp.zeros_like(c1_scr)

    # ---- Phase 1: layer-0 input projection, hoisted out of the recurrence --
    g0 = jnp.dot(x_ref[...], wih0_ref[...], preferred_element_type=jnp.float32)
    gates0_scr[...] = g0 + b0_ref[...]

    # ---- Phase 2: serial recurrence ----------------------------------------
    whh0 = whh0_ref[...]          # loop-invariant loads, kept resident
    wih1 = wih1_ref[...]
    whh1 = whh1_ref[...]
    b1 = b1_ref[...]

    def gate_update(gates, c_prev):
        if 4 * H <= 128:
            # All 4 gates fit one vreg: full-width EUP pass, then lane slices.
            sig = jax.nn.sigmoid(gates)
            th = jnp.tanh(gates)
            i = sig[:, 0 * H:1 * H]
            f = sig[:, 1 * H:2 * H]
            g = th[:, 2 * H:3 * H]
            o = sig[:, 3 * H:4 * H]
        else:
            # Production H: slice per gate BEFORE the nonlinearity
            # (3 sigmoid tiles + 1 tanh tile instead of 2 x 4 tiles of EUP).
            i = jax.nn.sigmoid(gates[:, 0 * H:1 * H])
            f = jax.nn.sigmoid(gates[:, 1 * H:2 * H])
            g = jnp.tanh(gates[:, 2 * H:3 * H])
            o = jax.nn.sigmoid(gates[:, 3 * H:4 * H])
        c = f * c_prev + i * g
        h = o * jnp.tanh(c)
        return h, c

    def row_start(t):
        if isinstance(t, int):            # unrolled path: static offset
            return t * B
        return pl.multiple_of(t * B, 8)   # fori path: aligned-slice hint

    def step(t, carry):
        h0, c0, h1, c1 = carry
        # Layer-1 recurrent matmul first: only needs last step's h1, so it can
        # overlap layer-0's recurrent matmul + EUP chain below.
        g1_rec = jnp.dot(h1, whh1, preferred_element_type=jnp.float32)
        r = row_start(t)
        # Layer 0: input part precomputed; only the h-recurrent matmul remains.
        gates_l0 = gates0_scr[pl.ds(r, B), :] + jnp.dot(
            h0, whh0, preferred_element_type=jnp.float32)
        h0, c0 = gate_update(gates_l0, c0)
        # Layer 1.
        gates_l1 = jnp.dot(h0, wih1,
                           preferred_element_type=jnp.float32) + g1_rec + b1
        h1, c1 = gate_update(gates_l1, c1)
        h1seq_scr[pl.ds(r, B), :] = h1
        return (h0, c0, h1, c1)

    carry = (h0_scr[...], c0_scr[...], h1_scr[...], c1_scr[...])
    if S_chunk * H <= 4096:
        # Small static work: full unroll gives the scheduler cross-step overlap
        # without risking vreg-spill blowup.
        for t in range(S_chunk):
            carry = step(t, carry)
    else:
        carry = jax.lax.fori_loop(0, S_chunk, step, carry, unroll=4)

    h0_f, c0_f, h1_f, c1_f = carry
    h0_scr[...] = h0_f
    c0_scr[...] = c0_f
    h1_scr[...] = h1_f
    c1_scr[...] = c1_f

    # ---- Phase 3: output Linear, one bulk matmul + single store -------------
    y = jnp.dot(h1seq_scr[...], wlin_ref[...],
                preferred_element_type=jnp.float32)
    out_ref[...] = (y + blin_ref[...]).astype(out_ref.dtype)


# -----------------------------------------------------------------------------
# Wrapper
# -----------------------------------------------------------------------------
def _round_up(v, m):
    return ((v + m - 1) // m) * m


def _tile_bytes(r, c, itemsize=4):
    # f32 (8,128)-tile-padded VMEM footprint of an (r, c) array.
    return (pl.cdiv(r, 8) * 8) * (pl.cdiv(c, 128) * 128) * itemsize


@functools.partial(jax.jit, static_argnames=("seq_chunk",))
def generator_forward(x, params, *, seq_chunk=64):
    """x: (B, S, D) float32 (PyTorch batch_first layout) -> (B, S, O)."""
    B, S, D = x.shape
    H = params["whh0"].shape[0]
    O = params["wlin"].shape[1]

    # Pad batch to a sublane multiple; pad sequence to a chunk multiple.
    # Padded batch rows are independent and padded timesteps are appended at
    # the end, so outputs for the real (B, S) region are unchanged.
    B_pad = _round_up(B, 8)
    S_chunk = min(S, seq_chunk)
    S_pad = _round_up(S, S_chunk)
    n_chunks = S_pad // S_chunk
    rows = S_chunk * B_pad

    # All layout plumbing lives in the wrapper (free under XLA): time-major,
    # flattened 2-D input / output.
    x_p = jnp.pad(x, ((0, B_pad - B), (0, S_pad - S), (0, 0)))
    x2d = jnp.transpose(x_p, (1, 0, 2)).reshape(S_pad * B_pad, D)

    # PyTorch nn.LSTM has two biases per layer; sum them here (both zero for
    # this module's init, but correct for real checkpoints too).
    b0 = (params["b_ih0"] + params["b_hh0"]).reshape(1, 4 * H)
    b1 = (params["b_ih1"] + params["b_hh1"]).reshape(1, 4 * H)
    blin = params["blin"].reshape(1, O)

    # Scoped-VMEM limit sized from the actual block + scratch footprint.
    vmem_est = (
        2 * _tile_bytes(rows, D) + 2 * _tile_bytes(rows, O)       # x/out (x2 buf)
        + _tile_bytes(D, 4 * H) + 3 * _tile_bytes(H, 4 * H)       # LSTM weights
        + 2 * _tile_bytes(1, 4 * H)                               # LSTM biases
        + _tile_bytes(H, O) + _tile_bytes(1, O)                   # Linear
        + _tile_bytes(rows, 4 * H) + _tile_bytes(rows, H)         # scratches
        + 4 * _tile_bytes(B_pad, H))                              # carries
    vmem_limit = int(min(64 * 2**20, max(32 * 2**20, 2 * vmem_est)))

    vmem_full = pl.BlockSpec(memory_space=pltpu.MemorySpace.VMEM)
    out2d = pl.pallas_call(
        functools.partial(generator_kernel, B_pad),
        out_shape=jax.ShapeDtypeStruct((S_pad * B_pad, O), jnp.float32),
        grid_spec=pltpu.PrefetchScalarGridSpec(
            num_scalar_prefetch=0,
            grid=(n_chunks,),
            in_specs=[pl.BlockSpec((rows, D), lambda si: (si, 0))]
                     + [vmem_full] * 8,
            out_specs=pl.BlockSpec((rows, O), lambda si: (si, 0)),
            scratch_shapes=[
                pltpu.VMEM((B_pad, H), jnp.float32),      # h0 carry
                pltpu.VMEM((B_pad, H), jnp.float32),      # c0 carry
                pltpu.VMEM((B_pad, H), jnp.float32),      # h1 carry
                pltpu.VMEM((B_pad, H), jnp.float32),      # c1 carry
                pltpu.VMEM((rows, 4 * H), jnp.float32),   # hoisted layer-0 gates
                pltpu.VMEM((rows, H), jnp.float32),       # per-step h1 outputs
            ]),
        compiler_params=pltpu.CompilerParams(
            dimension_semantics=("arbitrary",),
            vmem_limit_bytes=vmem_limit),
    )(x2d,
      params["wih0"], params["whh0"], b0,
      params["wih1"], params["whh1"], b1,
      params["wlin"], blin)

    out = out2d.reshape(S_pad, B_pad, O).transpose(1, 0, 2)
    return out[:B, :S]


# -----------------------------------------------------------------------------
# Deterministic parameter init (matches nn.LSTM / nn.Linear shapes;
# xavier-uniform weights, zero biases, as in Generator.init_weights)
# -----------------------------------------------------------------------------
def xavier_uniform(key, shape):
    fan_out, fan_in = shape  # PyTorch convention: (out, in)
    bound = float(np.sqrt(6.0 / (fan_in + fan_out)))
    return jax.random.uniform(key, shape, jnp.float32, -bound, bound)


def init_params(key, latent_dim, hidden, output_dim):
    k = jax.random.split(key, 5)
    H = hidden
    z4h = jnp.zeros((4 * H,), jnp.float32)
    # PyTorch stores W_ih: (4H, in), W_hh: (4H, H); we pass transposed copies.
    return {
        "wih0": xavier_uniform(k[0], (4 * H, latent_dim)).T,   # (D, 4H)
        "whh0": xavier_uniform(k[1], (4 * H, H)).T,            # (H, 4H)
        "b_ih0": z4h, "b_hh0": z4h,
        "wih1": xavier_uniform(k[2], (4 * H, H)).T,            # (H, 4H)
        "whh1": xavier_uniform(k[3], (4 * H, H)).T,            # (H, 4H)
        "b_ih1": z4h, "b_hh1": z4h,
        "wlin": xavier_uniform(k[4], (output_dim, H)).T,       # (H, O)
        "blin": jnp.zeros((output_dim,), jnp.float32),
    }


# -----------------------------------------------------------------------------
# Pure-JAX reference (for correctness check)
# -----------------------------------------------------------------------------
def reference_forward(x, params):
    B, S, D = x.shape
    H = params["whh0"].shape[0]
    b0 = params["b_ih0"] + params["b_hh0"]
    b1 = params["b_ih1"] + params["b_hh1"]

    def cell(x_t, h, c, wih, whh, b):
        g = x_t @ wih + h @ whh + b
        i = jax.nn.sigmoid(g[:, 0 * H:1 * H])
        f = jax.nn.sigmoid(g[:, 1 * H:2 * H])
        gg = jnp.tanh(g[:, 2 * H:3 * H])
        o = jax.nn.sigmoid(g[:, 3 * H:4 * H])
        c = f * c + i * gg
        h = o * jnp.tanh(c)
        return h, c

    def step(carry, x_t):
        h0, c0, h1, c1 = carry
        h0, c0 = cell(x_t, h0, c0, params["wih0"], params["whh0"], b0)
        h1, c1 = cell(h0, h1, c1, params["wih1"], params["whh1"], b1)
        y = h1 @ params["wlin"] + params["blin"]
        return (h0, c0, h1, c1), y

    z = jnp.zeros((B, H), jnp.float32)
    _, ys = jax.lax.scan(step, (z, z, z, z), jnp.transpose(x, (1, 0, 2)))
    return jnp.transpose(ys, (1, 0, 2))


# -----------------------------------------------------------------------------
if __name__ == "__main__":
    LATENT, HIDDEN, OUTPUT = 16, 32, 8
    BATCH, SEQ = 8, 8

    key = jax.random.PRNGKey(0)
    k_x, k_p = jax.random.split(key)
    x = jax.random.normal(k_x, (BATCH, SEQ, LATENT), jnp.float32)
    params = init_params(k_p, LATENT, HIDDEN, OUTPUT)

    out = generator_forward(x, params)
    out = jax.block_until_ready(out)

    ref = jax.block_until_ready(reference_forward(x, params))
    assert out.shape == (BATCH, SEQ, OUTPUT)
    np.testing.assert_allclose(np.asarray(out), np.asarray(ref),
                               rtol=1e-4, atol=1e-4)
    print("KERNEL_OK")
</pallas_src>

<mosaic_0001>
module attributes {stable_mosaic.version = 11 : i64} {
  func.func @generator_kernel(%arg0: i32, %arg1: memref<64x16xf32, #tpu.memory_space<vmem>>, %arg2: memref<16x128xf32, #tpu.memory_space<vmem>>, %arg3: memref<32x128xf32, #tpu.memory_space<vmem>>, %arg4: memref<1x128xf32, #tpu.memory_space<vmem>>, %arg5: memref<32x128xf32, #tpu.memory_space<vmem>>, %arg6: memref<32x128xf32, #tpu.memory_space<vmem>>, %arg7: memref<1x128xf32, #tpu.memory_space<vmem>>, %arg8: memref<32x8xf32, #tpu.memory_space<vmem>>, %arg9: memref<1x8xf32, #tpu.memory_space<vmem>>, %arg10: memref<64x8xf32, #tpu.memory_space<vmem>>, %arg11: memref<8x32xf32, #tpu.memory_space<vmem>>, %arg12: memref<8x32xf32, #tpu.memory_space<vmem>>, %arg13: memref<8x32xf32, #tpu.memory_space<vmem>>, %arg14: memref<8x32xf32, #tpu.memory_space<vmem>>, %arg15: memref<64x128xf32, #tpu.memory_space<vmem>>, %arg16: memref<64x32xf32, #tpu.memory_space<vmem>>) attributes {dimension_semantics = [#tpu.dimension_semantics<arbitrary>], iteration_bounds = array<i64: 1>, scalar_prefetch = 0 : i64, scratch_operands = 6 : i64, tpu.core_type = #tpu.core_type<tc>, window_params = [{transform_indices = @transform_0, window_bounds = array<i64: 64, 16>}, {pipeline_mode = #tpu.pipeline_mode<synchronous>, transform_indices = @transform_1, window_bounds = array<i64: 16, 128>}, {pipeline_mode = #tpu.pipeline_mode<synchronous>, transform_indices = @transform_2, window_bounds = array<i64: 32, 128>}, {pipeline_mode = #tpu.pipeline_mode<synchronous>, transform_indices = @transform_3, window_bounds = array<i64: 1, 128>}, {pipeline_mode = #tpu.pipeline_mode<synchronous>, transform_indices = @transform_4, window_bounds = array<i64: 32, 128>}, {pipeline_mode = #tpu.pipeline_mode<synchronous>, transform_indices = @transform_5, window_bounds = array<i64: 32, 128>}, {pipeline_mode = #tpu.pipeline_mode<synchronous>, transform_indices = @transform_6, window_bounds = array<i64: 1, 128>}, {pipeline_mode = #tpu.pipeline_mode<synchronous>, transform_indices = @transform_7, window_bounds = array<i64: 32, 8>}, {pipeline_mode = #tpu.pipeline_mode<synchronous>, transform_indices = @transform_8, window_bounds = array<i64: 1, 8>}, {transform_indices = @transform_9, window_bounds = array<i64: 64, 8>}]} {
    %c0_i32 = arith.constant 0 : i32
    %0 = arith.cmpi eq, %arg0, %c0_i32 : i32
    %1 = arith.extui %0 : i1 to i32
    %c0_i32_0 = arith.constant 0 : i32
    %2 = arith.cmpi ne, %1, %c0_i32_0 : i32
    scf.if %2 {
      %cst_106 = arith.constant 0.000000e+00 : f32
      %341 = vector.broadcast %cst_106 : f32 to vector<8x32xf32>
      %c0_107 = arith.constant 0 : index
      %c0_108 = arith.constant 0 : index
      %342 = vector.load %arg11[%c0_107, %c0_108] : memref<8x32xf32, #tpu.memory_space<vmem>>, vector<8x32xf32>
      tpu.vector_store %arg11[%c0_107, %c0_108], %341 {strides = array<i32>} : memref<8x32xf32, #tpu.memory_space<vmem>>, vector<8x32xf32>,
      %cst_109 = arith.constant 0.000000e+00 : f32
      %343 = vector.broadcast %cst_109 : f32 to vector<8x32xf32>
      %c0_110 = arith.constant 0 : index
      %c0_111 = arith.constant 0 : index
      %344 = vector.load %arg12[%c0_110, %c0_111] : memref<8x32xf32, #tpu.memory_space<vmem>>, vector<8x32xf32>
      tpu.vector_store %arg12[%c0_110, %c0_111], %343 {strides = array<i32>} : memref<8x32xf32, #tpu.memory_space<vmem>>, vector<8x32xf32>,
      %cst_112 = arith.constant 0.000000e+00 : f32
      %345 = vector.broadcast %cst_112 : f32 to vector<8x32xf32>
      %c0_113 = arith.constant 0 : index
      %c0_114 = arith.constant 0 : index
      %346 = vector.load %arg13[%c0_113, %c0_114] : memref<8x32xf32, #tpu.memory_space<vmem>>, vector<8x32xf32>
      tpu.vector_store %arg13[%c0_113, %c0_114], %345 {strides = array<i32>} : memref<8x32xf32, #tpu.memory_space<vmem>>, vector<8x32xf32>,
      %cst_115 = arith.constant 0.000000e+00 : f32
      %347 = vector.broadcast %cst_115 : f32 to vector<8x32xf32>
      %c0_116 = arith.constant 0 : index
      %c0_117 = arith.constant 0 : index
      %348 = vector.load %arg14[%c0_116, %c0_117] : memref<8x32xf32, #tpu.memory_space<vmem>>, vector<8x32xf32>
      tpu.vector_store %arg14[%c0_116, %c0_117], %347 {strides = array<i32>} : memref<8x32xf32, #tpu.memory_space<vmem>>, vector<8x32xf32>,
    } else {
    }
    %c0 = arith.constant 0 : index
    %c0_1 = arith.constant 0 : index
    %3 = vector.load %arg1[%c0, %c0_1] : memref<64x16xf32, #tpu.memory_space<vmem>>, vector<64x16xf32>
    %c0_2 = arith.constant 0 : index
    %c0_3 = arith.constant 0 : index
    %4 = vector.load %arg2[%c0_2, %c0_3] : memref<16x128xf32, #tpu.memory_space<vmem>>, vector<16x128xf32>
    %cst = arith.constant dense<0.000000e+00> : vector<64x128xf32>
    %5 = tpu.matmul %3, %4, %cst {dimension_numbers = #tpu.dot_dimension_numbers<[1], [0], [0], [1], [0, 0, 1, 1], [], []>} : vector<64x16xf32>, vector<16x128xf32>, vector<64x128xf32> -> vector<64x128xf32>
    %c0_4 = arith.constant 0 : index
    %c0_5 = arith.constant 0 : index
    %6 = vector.load %arg4[%c0_4, %c0_5] : memref<1x128xf32, #tpu.memory_space<vmem>>, vector<1x128xf32>
    %7 = vector.broadcast %6 : vector<1x128xf32> to vector<64x128xf32>
    %8 = arith.addf %5, %7 : vector<64x128xf32>
    %c0_6 = arith.constant 0 : index
    %c0_7 = arith.constant 0 : index
    %9 = vector.load %arg15[%c0_6, %c0_7] : memref<64x128xf32, #tpu.memory_space<vmem>>, vector<64x128xf32>
    tpu.vector_store %arg15[%c0_6, %c0_7], %8 {strides = array<i32>} : memref<64x128xf32, #tpu.memory_space<vmem>>, vector<64x128xf32>,
    %c0_8 = arith.constant 0 : index
    %c0_9 = arith.constant 0 : index
    %10 = vector.load %arg3[%c0_8, %c0_9] : memref<32x128xf32, #tpu.memory_space<vmem>>, vector<32x128xf32>
    %c0_10 = arith.constant 0 : index
    %c0_11 = arith.constant 0 : index
    %11 = vector.load %arg5[%c0_10, %c0_11] : memref<32x128xf32, #tpu.memory_space<vmem>>, vector<32x128xf32>
    %c0_12 = arith.constant 0 : index
    %c0_13 = arith.constant 0 : index
    %12 = vector.load %arg6[%c0_12, %c0_13] : memref<32x128xf32, #tpu.memory_space<vmem>>, vector<32x128xf32>
    %c0_14 = arith.constant 0 : index
    %c0_15 = arith.constant 0 : index
    %13 = vector.load %arg7[%c0_14, %c0_15] : memref<1x128xf32, #tpu.memory_space<vmem>>, vector<1x128xf32>
    %c0_16 = arith.constant 0 : index
    %c0_17 = arith.constant 0 : index
    %14 = vector.load %arg11[%c0_16, %c0_17] : memref<8x32xf32, #tpu.memory_space<vmem>>, vector<8x32xf32>
    %c0_18 = arith.constant 0 : index
    %c0_19 = arith.constant 0 : index
    %15 = vector.load %arg12[%c0_18, %c0_19] : memref<8x32xf32, #tpu.memory_space<vmem>>, vector<8x32xf32>
    %c0_20 = arith.constant 0 : index
    %c0_21 = arith.constant 0 : index
    %16 = vector.load %arg13[%c0_20, %c0_21] : memref<8x32xf32, #tpu.memory_space<vmem>>, vector<8x32xf32>
    %c0_22 = arith.constant 0 : index
    %c0_23 = arith.constant 0 : index
    %17 = vector.load %arg14[%c0_22, %c0_23] : memref<8x32xf32, #tpu.memory_space<vmem>>, vector<8x32xf32>
    %cst_24 = arith.constant dense<0.000000e+00> : vector<8x128xf32>
    %18 = tpu.matmul %16, %12, %cst_24 {dimension_numbers = #tpu.dot_dimension_numbers<[1], [0], [0], [1], [0, 0, 1, 1], [], []>} : vector<8x32xf32>, vector<32x128xf32>, vector<8x128xf32> -> vector<8x128xf32>
    %c0_25 = arith.constant 0 : index
    %c0_26 = arith.constant 0 : index
    %19 = vector.load %arg15[%c0_25, %c0_26] : memref<64x128xf32, #tpu.memory_space<vmem>>, vector<8x128xf32>
    %cst_27 = arith.constant dense<0.000000e+00> : vector<8x128xf32>
    %20 = tpu.matmul %14, %10, %cst_27 {dimension_numbers = #tpu.dot_dimension_numbers<[1], [0], [0], [1], [0, 0, 1, 1], [], []>} : vector<8x32xf32>, vector<32x128xf32>, vector<8x128xf32> -> vector<8x128xf32>
    %21 = arith.addf %19, %20 : vector<8x128xf32>
    %22 = arith.negf %21 : vector<8x128xf32>
    %23 = math.exp %22 : vector<8x128xf32>
    %cst_28 = arith.constant 1.000000e+00 : f32
    %24 = vector.broadcast %cst_28 : f32 to vector<8x128xf32>
    %25 = arith.addf %24, %23 : vector<8x128xf32>
    %26 = arith.divf %24, %25 : vector<8x128xf32>
    %27 = math.tanh %21 : vector<8x128xf32>
    %28 = vector.extract_strided_slice %26 {offsets = [0, 0], sizes = [8, 32], strides = [1, 1]} : vector<8x128xf32> to vector<8x32xf32>
    %29 = vector.extract_strided_slice %26 {offsets = [0, 32], sizes = [8, 32], strides = [1, 1]} : vector<8x128xf32> to vector<8x32xf32>
    %30 = vector.extract_strided_slice %27 {offsets = [0, 64], sizes = [8, 32], strides = [1, 1]} : vector<8x128xf32> to vector<8x32xf32>
    %31 = vector.extract_strided_slice %26 {offsets = [0, 96], sizes = [8, 32], strides = [1, 1]} : vector<8x128xf32> to vector<8x32xf32>
    %32 = arith.mulf %29, %15 : vector<8x32xf32>
    %33 = arith.mulf %28, %30 : vector<8x32xf32>
    %34 = arith.addf %32, %33 : vector<8x32xf32>
    %35 = math.tanh %34 : vector<8x32xf32>
    %36 = arith.mulf %31, %35 : vector<8x32xf32>
    %cst_29 = arith.constant dense<0.000000e+00> : vector<8x128xf32>
    %37 = tpu.matmul %36, %11, %cst_29 {dimension_numbers = #tpu.dot_dimension_numbers<[1], [0], [0], [1], [0, 0, 1, 1], [], []>} : vector<8x32xf32>, vector<32x128xf32>, vector<8x128xf32> -> vector<8x128xf32>
    %38 = arith.addf %37, %18 : vector<8x128xf32>
    %39 = vector.broadcast %13 : vector<1x128xf32> to vector<8x128xf32>
    %40 = arith.addf %38, %39 : vector<8x128xf32>
    %41 = arith.negf %40 : vector<8x128xf32>
    %42 = math.exp %41 : vector<8x128xf32>
    %cst_30 = arith.constant 1.000000e+00 : f32
    %43 = vector.broadcast %cst_30 : f32 to vector<8x128xf32>
    %44 = arith.addf %43, %42 : vector<8x128xf32>
    %45 = arith.divf %43, %44 : vector<8x128xf32>
    %46 = math.tanh %40 : vector<8x128xf32>
    %47 = vector.extract_strided_slice %45 {offsets = [0, 0], sizes = [8, 32], strides = [1, 1]} : vector<8x128xf32> to vector<8x32xf32>
    %48 = vector.extract_strided_slice %45 {offsets = [0, 32], sizes = [8, 32], strides = [1, 1]} : vector<8x128xf32> to vector<8x32xf32>
    %49 = vector.extract_strided_slice %46 {offsets = [0, 64], sizes = [8, 32], strides = [1, 1]} : vector<8x128xf32> to vector<8x32xf32>
    %50 = vector.extract_strided_slice %45 {offsets = [0, 96], sizes = [8, 32], strides = [1, 1]} : vector<8x128xf32> to vector<8x32xf32>
    %51 = arith.mulf %48, %17 : vector<8x32xf32>
    %52 = arith.mulf %47, %49 : vector<8x32xf32>
    %53 = arith.addf %51, %52 : vector<8x32xf32>
    %54 = math.tanh %53 : vector<8x32xf32>
    %55 = arith.mulf %50, %54 : vector<8x32xf32>
    %c0_31 = arith.constant 0 : index
    %c0_32 = arith.constant 0 : index
    %56 = vector.load %arg16[%c0_31, %c0_32] : memref<64x32xf32, #tpu.memory_space<vmem>>, vector<8x32xf32>
    tpu.vector_store %arg16[%c0_31, %c0_32], %55 {strides = array<i32>} : memref<64x32xf32, #tpu.memory_space<vmem>>, vector<8x32xf32>,
    %cst_33 = arith.constant dense<0.000000e+00> : vector<8x128xf32>
    %57 = tpu.matmul %55, %12, %cst_33 {dimension_numbers = #tpu.dot_dimension_numbers<[1], [0], [0], [1], [0, 0, 1, 1], [], []>} : vector<8x32xf32>, vector<32x128xf32>, vector<8x128xf32> -> vector<8x128xf32>
    %c8 = arith.constant 8 : index
    %c0_34 = arith.constant 0 : index
    %58 = vector.load %arg15[%c8, %c0_34] : memref<64x128xf32, #tpu.memory_space<vmem>>, vector<8x128xf32>
    %cst_35 = arith.constant dense<0.000000e+00> : vector<8x128xf32>
    %59 = tpu.matmul %36, %10, %cst_35 {dimension_numbers = #tpu.dot_dimension_numbers<[1], [0], [0], [1], [0, 0, 1, 1], [], []>} : vector<8x32xf32>, vector<32x128xf32>, vector<8x128xf32> -> vector<8x128xf32>
    %60 = arith.addf %58, %59 : vector<8x128xf32>
    %61 = arith.negf %60 : vector<8x128xf32>
    %62 = math.exp %61 : vector<8x128xf32>
    %cst_36 = arith.constant 1.000000e+00 : f32
    %63 = vector.broadcast %cst_36 : f32 to vector<8x128xf32>
    %64 = arith.addf %63, %62 : vector<8x128xf32>
    %65 = arith.divf %63, %64 : vector<8x128xf32>
    %66 = math.tanh %60 : vector<8x128xf32>
    %67 = vector.extract_strided_slice %65 {offsets = [0, 0], sizes = [8, 32], strides = [1, 1]} : vector<8x128xf32> to vector<8x32xf32>
    %68 = vector.extract_strided_slice %65 {offsets = [0, 32], sizes = [8, 32], strides = [1, 1]} : vector<8x128xf32> to vector<8x32xf32>
    %69 = vector.extract_strided_slice %66 {offsets = [0, 64], sizes = [8, 32], strides = [1, 1]} : vector<8x128xf32> to vector<8x32xf32>
    %70 = vector.extract_strided_slice %65 {offsets = [0, 96], sizes = [8, 32], strides = [1, 1]} : vector<8x128xf32> to vector<8x32xf32>
    %71 = arith.mulf %68, %34 : vector<8x32xf32>
    %72 = arith.mulf %67, %69 : vector<8x32xf32>
    %73 = arith.addf %71, %72 : vector<8x32xf32>
    %74 = math.tanh %73 : vector<8x32xf32>
    %75 = arith.mulf %70, %74 : vector<8x32xf32>
    %cst_37 = arith.constant dense<0.000000e+00> : vector<8x128xf32>
    %76 = tpu.matmul %75, %11, %cst_37 {dimension_numbers = #tpu.dot_dimension_numbers<[1], [0], [0], [1], [0, 0, 1, 1], [], []>} : vector<8x32xf32>, vector<32x128xf32>, vector<8x128xf32> -> vector<8x128xf32>
    %77 = arith.addf %76, %57 : vector<8x128xf32>
    %78 = vector.broadcast %13 : vector<1x128xf32> to vector<8x128xf32>
    %79 = arith.addf %77, %78 : vector<8x128xf32>
    %80 = arith.negf %79 : vector<8x128xf32>
    %81 = math.exp %80 : vector<8x128xf32>
    %cst_38 = arith.constant 1.000000e+00 : f32
    %82 = vector.broadcast %cst_38 : f32 to vector<8x128xf32>
    %83 = arith.addf %82, %81 : vector<8x128xf32>
    %84 = arith.divf %82, %83 : vector<8x128xf32>
    %85 = math.tanh %79 : vector<8x128xf32>
    %86 = vector.extract_strided_slice %84 {offsets = [0, 0], sizes = [8, 32], strides = [1, 1]} : vector<8x128xf32> to vector<8x32xf32>
    %87 = vector.extract_strided_slice %84 {offsets = [0, 32], sizes = [8, 32], strides = [1, 1]} : vector<8x128xf32> to vector<8x32xf32>
    %88 = vector.extract_strided_slice %85 {offsets = [0, 64], sizes = [8, 32], strides = [1, 1]} : vector<8x128xf32> to vector<8x32xf32>
    %89 = vector.extract_strided_slice %84 {offsets = [0, 96], sizes = [8, 32], strides = [1, 1]} : vector<8x128xf32> to vector<8x32xf32>
    %90 = arith.mulf %87, %53 : vector<8x32xf32>
    %91 = arith.mulf %86, %88 : vector<8x32xf32>
    %92 = arith.addf %90, %91 : vector<8x32xf32>
    %93 = math.tanh %92 : vector<8x32xf32>
    %94 = arith.mulf %89, %93 : vector<8x32xf32>
    %c8_39 = arith.constant 8 : index
    %c0_40 = arith.constant 0 : index
    %95 = vector.load %arg16[%c8_39, %c0_40] : memref<64x32xf32, #tpu.memory_space<vmem>>, vector<8x32xf32>
    tpu.vector_store %arg16[%c8_39, %c0_40], %94 {strides = array<i32>} : memref<64x32xf32, #tpu.memory_space<vmem>>, vector<8x32xf32>,
    %cst_41 = arith.constant dense<0.000000e+00> : vector<8x128xf32>
    %96 = tpu.matmul %94, %12, %cst_41 {dimension_numbers = #tpu.dot_dimension_numbers<[1], [0], [0], [1], [0, 0, 1, 1], [], []>} : vector<8x32xf32>, vector<32x128xf32>, vector<8x128xf32> -> vector<8x128xf32>
    %c16 = arith.constant 16 : index
    %c0_42 = arith.constant 0 : index
    %97 = vector.load %arg15[%c16, %c0_42] : memref<64x128xf32, #tpu.memory_space<vmem>>, vector<8x128xf32>
    %cst_43 = arith.constant dense<0.000000e+00> : vector<8x128xf32>
    %98 = tpu.matmul %75, %10, %cst_43 {dimension_numbers = #tpu.dot_dimension_numbers<[1], [0], [0], [1], [0, 0, 1, 1], [], []>} : vector<8x32xf32>, vector<32x128xf32>, vector<8x128xf32> -> vector<8x128xf32>
    %99 = arith.addf %97, %98 : vector<8x128xf32>
    %100 = arith.negf %99 : vector<8x128xf32>
    %101 = math.exp %100 : vector<8x128xf32>
    %cst_44 = arith.constant 1.000000e+00 : f32
    %102 = vector.broadcast %cst_44 : f32 to vector<8x128xf32>
    %103 = arith.addf %102, %101 : vector<8x128xf32>
    %104 = arith.divf %102, %103 : vector<8x128xf32>
    %105 = math.tanh %99 : vector<8x128xf32>
    %106 = vector.extract_strided_slice %104 {offsets = [0, 0], sizes = [8, 32], strides = [1, 1]} : vector<8x128xf32> to vector<8x32xf32>
    %107 = vector.extract_strided_slice %104 {offsets = [0, 32], sizes = [8, 32], strides = [1, 1]} : vector<8x128xf32> to vector<8x32xf32>
    %108 = vector.extract_strided_slice %105 {offsets = [0, 64], sizes = [8, 32], strides = [1, 1]} : vector<8x128xf32> to vector<8x32xf32>
    %109 = vector.extract_strided_slice %104 {offsets = [0, 96], sizes = [8, 32], strides = [1, 1]} : vector<8x128xf32> to vector<8x32xf32>
    %110 = arith.mulf %107, %73 : vector<8x32xf32>
    %111 = arith.mulf %106, %108 : vector<8x32xf32>
    %112 = arith.addf %110, %111 : vector<8x32xf32>
    %113 = math.tanh %112 : vector<8x32xf32>
    %114 = arith.mulf %109, %113 : vector<8x32xf32>
    %cst_45 = arith.constant dense<0.000000e+00> : vector<8x128xf32>
    %115 = tpu.matmul %114, %11, %cst_45 {dimension_numbers = #tpu.dot_dimension_numbers<[1], [0], [0], [1], [0, 0, 1, 1], [], []>} : vector<8x32xf32>, vector<32x128xf32>, vector<8x128xf32> -> vector<8x128xf32>
    %116 = arith.addf %115, %96 : vector<8x128xf32>
    %117 = vector.broadcast %13 : vector<1x128xf32> to vector<8x128xf32>
    %118 = arith.addf %116, %117 : vector<8x128xf32>
    %119 = arith.negf %118 : vector<8x128xf32>
    %120 = math.exp %119 : vector<8x128xf32>
    %cst_46 = arith.constant 1.000000e+00 : f32
    %121 = vector.broadcast %cst_46 : f32 to vector<8x128xf32>
    %122 = arith.addf %121, %120 : vector<8x128xf32>
    %123 = arith.divf %121, %122 : vector<8x128xf32>
    %124 = math.tanh %118 : vector<8x128xf32>
    %125 = vector.extract_strided_slice %123 {offsets = [0, 0], sizes = [8, 32], strides = [1, 1]} : vector<8x128xf32> to vector<8x32xf32>
    %126 = vector.extract_strided_slice %123 {offsets = [0, 32], sizes = [8, 32], strides = [1, 1]} : vector<8x128xf32> to vector<8x32xf32>
    %127 = vector.extract_strided_slice %124 {offsets = [0, 64], sizes = [8, 32], strides = [1, 1]} : vector<8x128xf32> to vector<8x32xf32>
    %128 = vector.extract_strided_slice %123 {offsets = [0, 96], sizes = [8, 32], strides = [1, 1]} : vector<8x128xf32> to vector<8x32xf32>
    %129 = arith.mulf %126, %92 : vector<8x32xf32>
    %130 = arith.mulf %125, %127 : vector<8x32xf32>
    %131 = arith.addf %129, %130 : vector<8x32xf32>
    %132 = math.tanh %131 : vector<8x32xf32>
    %133 = arith.mulf %128, %132 : vector<8x32xf32>
    %c16_47 = arith.constant 16 : index
    %c0_48 = arith.constant 0 : index
    %134 = vector.load %arg16[%c16_47, %c0_48] : memref<64x32xf32, #tpu.memory_space<vmem>>, vector<8x32xf32>
    tpu.vector_store %arg16[%c16_47, %c0_48], %133 {strides = array<i32>} : memref<64x32xf32, #tpu.memory_space<vmem>>, vector<8x32xf32>,
    %cst_49 = arith.constant dense<0.000000e+00> : vector<8x128xf32>
    %135 = tpu.matmul %133, %12, %cst_49 {dimension_numbers = #tpu.dot_dimension_numbers<[1], [0], [0], [1], [0, 0, 1, 1], [], []>} : vector<8x32xf32>, vector<32x128xf32>, vector<8x128xf32> -> vector<8x128xf32>
    %c24 = arith.constant 24 : index
    %c0_50 = arith.constant 0 : index
    %136 = vector.load %arg15[%c24, %c0_50] : memref<64x128xf32, #tpu.memory_space<vmem>>, vector<8x128xf32>
    %cst_51 = arith.constant dense<0.000000e+00> : vector<8x128xf32>
    %137 = tpu.matmul %114, %10, %cst_51 {dimension_numbers = #tpu.dot_dimension_numbers<[1], [0], [0], [1], [0, 0, 1, 1], [], []>} : vector<8x32xf32>, vector<32x128xf32>, vector<8x128xf32> -> vector<8x128xf32>
    %138 = arith.addf %136, %137 : vector<8x128xf32>
    %139 = arith.negf %138 : vector<8x128xf32>
    %140 = math.exp %139 : vector<8x128xf32>
    %cst_52 = arith.constant 1.000000e+00 : f32
    %141 = vector.broadcast %cst_52 : f32 to vector<8x128xf32>
    %142 = arith.addf %141, %140 : vector<8x128xf32>
    %143 = arith.divf %141, %142 : vector<8x128xf32>
    %144 = math.tanh %138 : vector<8x128xf32>
    %145 = vector.extract_strided_slice %143 {offsets = [0, 0], sizes = [8, 32], strides = [1, 1]} : vector<8x128xf32> to vector<8x32xf32>
    %146 = vector.extract_strided_slice %143 {offsets = [0, 32], sizes = [8, 32], strides = [1, 1]} : vector<8x128xf32> to vector<8x32xf32>
    %147 = vector.extract_strided_slice %144 {offsets = [0, 64], sizes = [8, 32], strides = [1, 1]} : vector<8x128xf32> to vector<8x32xf32>
    %148 = vector.extract_strided_slice %143 {offsets = [0, 96], sizes = [8, 32], strides = [1, 1]} : vector<8x128xf32> to vector<8x32xf32>
    %149 = arith.mulf %146, %112 : vector<8x32xf32>
    %150 = arith.mulf %145, %147 : vector<8x32xf32>
    %151 = arith.addf %149, %150 : vector<8x32xf32>
    %152 = math.tanh %151 : vector<8x32xf32>
    %153 = arith.mulf %148, %152 : vector<8x32xf32>
    %cst_53 = arith.constant dense<0.000000e+00> : vector<8x128xf32>
    %154 = tpu.matmul %153, %11, %cst_53 {dimension_numbers = #tpu.dot_dimension_numbers<[1], [0], [0], [1], [0, 0, 1, 1], [], []>} : vector<8x32xf32>, vector<32x128xf32>, vector<8x128xf32> -> vector<8x128xf32>
    %155 = arith.addf %154, %135 : vector<8x128xf32>
    %156 = vector.broadcast %13 : vector<1x128xf32> to vector<8x128xf32>
    %157 = arith.addf %155, %156 : vector<8x128xf32>
    %158 = arith.negf %157 : vector<8x128xf32>
    %159 = math.exp %158 : vector<8x128xf32>
    %cst_54 = arith.constant 1.000000e+00 : f32
    %160 = vector.broadcast %cst_54 : f32 to vector<8x128xf32>
    %161 = arith.addf %160, %159 : vector<8x128xf32>
    %162 = arith.divf %160, %161 : vector<8x128xf32>
    %163 = math.tanh %157 : vector<8x128xf32>
    %164 = vector.extract_strided_slice %162 {offsets = [0, 0], sizes = [8, 32], strides = [1, 1]} : vector<8x128xf32> to vector<8x32xf32>
    %165 = vector.extract_strided_slice %162 {offsets = [0, 32], sizes = [8, 32], strides = [1, 1]} : vector<8x128xf32> to vector<8x32xf32>
    %166 = vector.extract_strided_slice %163 {offsets = [0, 64], sizes = [8, 32], strides = [1, 1]} : vector<8x128xf32> to vector<8x32xf32>
    %167 = vector.extract_strided_slice %162 {offsets = [0, 96], sizes = [8, 32], strides = [1, 1]} : vector<8x128xf32> to vector<8x32xf32>
    %168 = arith.mulf %165, %131 : vector<8x32xf32>
    %169 = arith.mulf %164, %166 : vector<8x32xf32>
    %170 = arith.addf %168, %169 : vector<8x32xf32>
    %171 = math.tanh %170 : vector<8x32xf32>
    %172 = arith.mulf %167, %171 : vector<8x32xf32>
    %c24_55 = arith.constant 24 : index
    %c0_56 = arith.constant 0 : index
    %173 = vector.load %arg16[%c24_55, %c0_56] : memref<64x32xf32, #tpu.memory_space<vmem>>, vector<8x32xf32>
    tpu.vector_store %arg16[%c24_55, %c0_56], %172 {strides = array<i32>} : memref<64x32xf32, #tpu.memory_space<vmem>>, vector<8x32xf32>,
    %cst_57 = arith.constant dense<0.000000e+00> : vector<8x128xf32>
    %174 = tpu.matmul %172, %12, %cst_57 {dimension_numbers = #tpu.dot_dimension_numbers<[1], [0], [0], [1], [0, 0, 1, 1], [], []>} : vector<8x32xf32>, vector<32x128xf32>, vector<8x128xf32> -> vector<8x128xf32>
    %c32 = arith.constant 32 : index
    %c0_58 = arith.constant 0 : index
    %175 = vector.load %arg15[%c32, %c0_58] : memref<64x128xf32, #tpu.memory_space<vmem>>, vector<8x128xf32>
    %cst_59 = arith.constant dense<0.000000e+00> : vector<8x128xf32>
    %176 = tpu.matmul %153, %10, %cst_59 {dimension_numbers = #tpu.dot_dimension_numbers<[1], [0], [0], [1], [0, 0, 1, 1], [], []>} : vector<8x32xf32>, vector<32x128xf32>, vector<8x128xf32> -> vector<8x128xf32>
    %177 = arith.addf %175, %176 : vector<8x128xf32>
    %178 = arith.negf %177 : vector<8x128xf32>
    %179 = math.exp %178 : vector<8x128xf32>
    %cst_60 = arith.constant 1.000000e+00 : f32
    %180 = vector.broadcast %cst_60 : f32 to vector<8x128xf32>
    %181 = arith.addf %180, %179 : vector<8x128xf32>
    %182 = arith.divf %180, %181 : vector<8x128xf32>
    %183 = math.tanh %177 : vector<8x128xf32>
    %184 = vector.extract_strided_slice %182 {offsets = [0, 0], sizes = [8, 32], strides = [1, 1]} : vector<8x128xf32> to vector<8x32xf32>
    %185 = vector.extract_strided_slice %182 {offsets = [0, 32], sizes = [8, 32], strides = [1, 1]} : vector<8x128xf32> to vector<8x32xf32>
    %186 = vector.extract_strided_slice %183 {offsets = [0, 64], sizes = [8, 32], strides = [1, 1]} : vector<8x128xf32> to vector<8x32xf32>
    %187 = vector.extract_strided_slice %182 {offsets = [0, 96], sizes = [8, 32], strides = [1, 1]} : vector<8x128xf32> to vector<8x32xf32>
    %188 = arith.mulf %185, %151 : vector<8x32xf32>
    %189 = arith.mulf %184, %186 : vector<8x32xf32>
    %190 = arith.addf %188, %189 : vector<8x32xf32>
    %191 = math.tanh %190 : vector<8x32xf32>
    %192 = arith.mulf %187, %191 : vector<8x32xf32>
    %cst_61 = arith.constant dense<0.000000e+00> : vector<8x128xf32>
    %193 = tpu.matmul %192, %11, %cst_61 {dimension_numbers = #tpu.dot_dimension_numbers<[1], [0], [0], [1], [0, 0, 1, 1], [], []>} : vector<8x32xf32>, vector<32x128xf32>, vector<8x128xf32> -> vector<8x128xf32>
    %194 = arith.addf %193, %174 : vector<8x128xf32>
    %195 = vector.broadcast %13 : vector<1x128xf32> to vector<8x128xf32>
    %196 = arith.addf %194, %195 : vector<8x128xf32>
    %197 = arith.negf %196 : vector<8x128xf32>
    %198 = math.exp %197 : vector<8x128xf32>
    %cst_62 = arith.constant 1.000000e+00 : f32
    %199 = vector.broadcast %cst_62 : f32 to vector<8x128xf32>
    %200 = arith.addf %199, %198 : vector<8x128xf32>
    %201 = arith.divf %199, %200 : vector<8x128xf32>
    %202 = math.tanh %196 : vector<8x128xf32>
    %203 = vector.extract_strided_slice %201 {offsets = [0, 0], sizes = [8, 32], strides = [1, 1]} : vector<8x128xf32> to vector<8x32xf32>
    %204 = vector.extract_strided_slice %201 {offsets = [0, 32], sizes = [8, 32], strides = [1, 1]} : vector<8x128xf32> to vector<8x32xf32>
    %205 = vector.extract_strided_slice %202 {offsets = [0, 64], sizes = [8, 32], strides = [1, 1]} : vector<8x128xf32> to vector<8x32xf32>
    %206 = vector.extract_strided_slice %201 {offsets = [0, 96], sizes = [8, 32], strides = [1, 1]} : vector<8x128xf32> to vector<8x32xf32>
    %207 = arith.mulf %204, %170 : vector<8x32xf32>
    %208 = arith.mulf %203, %205 : vector<8x32xf32>
    %209 = arith.addf %207, %208 : vector<8x32xf32>
    %210 = math.tanh %209 : vector<8x32xf32>
    %211 = arith.mulf %206, %210 : vector<8x32xf32>
    %c32_63 = arith.constant 32 : index
    %c0_64 = arith.constant 0 : index
    %212 = vector.load %arg16[%c32_63, %c0_64] : memref<64x32xf32, #tpu.memory_space<vmem>>, vector<8x32xf32>
    tpu.vector_store %arg16[%c32_63, %c0_64], %211 {strides = array<i32>} : memref<64x32xf32, #tpu.memory_space<vmem>>, vector<8x32xf32>,
    %cst_65 = arith.constant dense<0.000000e+00> : vector<8x128xf32>
    %213 = tpu.matmul %211, %12, %cst_65 {dimension_numbers = #tpu.dot_dimension_numbers<[1], [0], [0], [1], [0, 0, 1, 1], [], []>} : vector<8x32xf32>, vector<32x128xf32>, vector<8x128xf32> -> vector<8x128xf32>
    %c40 = arith.constant 40 : index
    %c0_66 = arith.constant 0 : index
    %214 = vector.load %arg15[%c40, %c0_66] : memref<64x128xf32, #tpu.memory_space<vmem>>, vector<8x128xf32>
    %cst_67 = arith.constant dense<0.000000e+00> : vector<8x128xf32>
    %215 = tpu.matmul %192, %10, %cst_67 {dimension_numbers = #tpu.dot_dimension_numbers<[1], [0], [0], [1], [0, 0, 1, 1], [], []>} : vector<8x32xf32>, vector<32x128xf32>, vector<8x128xf32> -> vector<8x128xf32>
    %216 = arith.addf %214, %215 : vector<8x128xf32>
    %217 = arith.negf %216 : vector<8x128xf32>
    %218 = math.exp %217 : vector<8x128xf32>
    %cst_68 = arith.constant 1.000000e+00 : f32
    %219 = vector.broadcast %cst_68 : f32 to vector<8x128xf32>
    %220 = arith.addf %219, %218 : vector<8x128xf32>
    %221 = arith.divf %219, %220 : vector<8x128xf32>
    %222 = math.tanh %216 : vector<8x128xf32>
    %223 = vector.extract_strided_slice %221 {offsets = [0, 0], sizes = [8, 32], strides = [1, 1]} : vector<8x128xf32> to vector<8x32xf32>
    %224 = vector.extract_strided_slice %221 {offsets = [0, 32], sizes = [8, 32], strides = [1, 1]} : vector<8x128xf32> to vector<8x32xf32>
    %225 = vector.extract_strided_slice %222 {offsets = [0, 64], sizes = [8, 32], strides = [1, 1]} : vector<8x128xf32> to vector<8x32xf32>
    %226 = vector.extract_strided_slice %221 {offsets = [0, 96], sizes = [8, 32], strides = [1, 1]} : vector<8x128xf32> to vector<8x32xf32>
    %227 = arith.mulf %224, %190 : vector<8x32xf32>
    %228 = arith.mulf %223, %225 : vector<8x32xf32>
    %229 = arith.addf %227, %228 : vector<8x32xf32>
    %230 = math.tanh %229 : vector<8x32xf32>
    %231 = arith.mulf %226, %230 : vector<8x32xf32>
    %cst_69 = arith.constant dense<0.000000e+00> : vector<8x128xf32>
    %232 = tpu.matmul %231, %11, %cst_69 {dimension_numbers = #tpu.dot_dimension_numbers<[1], [0], [0], [1], [0, 0, 1, 1], [], []>} : vector<8x32xf32>, vector<32x128xf32>, vector<8x128xf32> -> vector<8x128xf32>
    %233 = arith.addf %232, %213 : vector<8x128xf32>
    %234 = vector.broadcast %13 : vector<1x128xf32> to vector<8x128xf32>
    %235 = arith.addf %233, %234 : vector<8x128xf32>
    %236 = arith.negf %235 : vector<8x128xf32>
    %237 = math.exp %236 : vector<8x128xf32>
    %cst_70 = arith.constant 1.000000e+00 : f32
    %238 = vector.broadcast %cst_70 : f32 to vector<8x128xf32>
    %239 = arith.addf %238, %237 : vector<8x128xf32>
    %240 = arith.divf %238, %239 : vector<8x128xf32>
    %241 = math.tanh %235 : vector<8x128xf32>
    %242 = vector.extract_strided_slice %240 {offsets = [0, 0], sizes = [8, 32], strides = [1, 1]} : vector<8x128xf32> to vector<8x32xf32>
    %243 = vector.extract_strided_slice %240 {offsets = [0, 32], sizes = [8, 32], strides = [1, 1]} : vector<8x128xf32> to vector<8x32xf32>
    %244 = vector.extract_strided_slice %241 {offsets = [0, 64], sizes = [8, 32], strides = [1, 1]} : vector<8x128xf32> to vector<8x32xf32>
    %245 = vector.extract_strided_slice %240 {offsets = [0, 96], sizes = [8, 32], strides = [1, 1]} : vector<8x128xf32> to vector<8x32xf32>
    %246 = arith.mulf %243, %209 : vector<8x32xf32>
    %247 = arith.mulf %242, %244 : vector<8x32xf32>
    %248 = arith.addf %246, %247 : vector<8x32xf32>
    %249 = math.tanh %248 : vector<8x32xf32>
    %250 = arith.mulf %245, %249 : vector<8x32xf32>
    %c40_71 = arith.constant 40 : index
    %c0_72 = arith.constant 0 : index
    %251 = vector.load %arg16[%c40_71, %c0_72] : memref<64x32xf32, #tpu.memory_space<vmem>>, vector<8x32xf32>
    tpu.vector_store %arg16[%c40_71, %c0_72], %250 {strides = array<i32>} : memref<64x32xf32, #tpu.memory_space<vmem>>, vector<8x32xf32>,
    %cst_73 = arith.constant dense<0.000000e+00> : vector<8x128xf32>
    %252 = tpu.matmul %250, %12, %cst_73 {dimension_numbers = #tpu.dot_dimension_numbers<[1], [0], [0], [1], [0, 0, 1, 1], [], []>} : vector<8x32xf32>, vector<32x128xf32>, vector<8x128xf32> -> vector<8x128xf32>
    %c48 = arith.constant 48 : index
    %c0_74 = arith.constant 0 : index
    %253 = vector.load %arg15[%c48, %c0_74] : memref<64x128xf32, #tpu.memory_space<vmem>>, vector<8x128xf32>
    %cst_75 = arith.constant dense<0.000000e+00> : vector<8x128xf32>
    %254 = tpu.matmul %231, %10, %cst_75 {dimension_numbers = #tpu.dot_dimension_numbers<[1], [0], [0], [1], [0, 0, 1, 1], [], []>} : vector<8x32xf32>, vector<32x128xf32>, vector<8x128xf32> -> vector<8x128xf32>
    %255 = arith.addf %253, %254 : vector<8x128xf32>
    %256 = arith.negf %255 : vector<8x128xf32>
    %257 = math.exp %256 : vector<8x128xf32>
    %cst_76 = arith.constant 1.000000e+00 : f32
    %258 = vector.broadcast %cst_76 : f32 to vector<8x128xf32>
    %259 = arith.addf %258, %257 : vector<8x128xf32>
    %260 = arith.divf %258, %259 : vector<8x128xf32>
    %261 = math.tanh %255 : vector<8x128xf32>
    %262 = vector.extract_strided_slice %260 {offsets = [0, 0], sizes = [8, 32], strides = [1, 1]} : vector<8x128xf32> to vector<8x32xf32>
    %263 = vector.extract_strided_slice %260 {offsets = [0, 32], sizes = [8, 32], strides = [1, 1]} : vector<8x128xf32> to vector<8x32xf32>
    %264 = vector.extract_strided_slice %261 {offsets = [0, 64], sizes = [8, 32], strides = [1, 1]} : vector<8x128xf32> to vector<8x32xf32>
    %265 = vector.extract_strided_slice %260 {offsets = [0, 96], sizes = [8, 32], strides = [1, 1]} : vector<8x128xf32> to vector<8x32xf32>
    %266 = arith.mulf %263, %229 : vector<8x32xf32>
    %267 = arith.mulf %262, %264 : vector<8x32xf32>
    %268 = arith.addf %266, %267 : vector<8x32xf32>
    %269 = math.tanh %268 : vector<8x32xf32>
    %270 = arith.mulf %265, %269 : vector<8x32xf32>
    %cst_77 = arith.constant dense<0.000000e+00> : vector<8x128xf32>
    %271 = tpu.matmul %270, %11, %cst_77 {dimension_numbers = #tpu.dot_dimension_numbers<[1], [0], [0], [1], [0, 0, 1, 1], [], []>} : vector<8x32xf32>, vector<32x128xf32>, vector<8x128xf32> -> vector<8x128xf32>
    %272 = arith.addf %271, %252 : vector<8x128xf32>
    %273 = vector.broadcast %13 : vector<1x128xf32> to vector<8x128xf32>
    %274 = arith.addf %272, %273 : vector<8x128xf32>
    %275 = arith.negf %274 : vector<8x128xf32>
    %276 = math.exp %275 : vector<8x128xf32>
    %cst_78 = arith.constant 1.000000e+00 : f32
    %277 = vector.broadcast %cst_78 : f32 to vector<8x128xf32>
    %278 = arith.addf %277, %276 : vector<8x128xf32>
    %279 = arith.divf %277, %278 : vector<8x128xf32>
    %280 = math.tanh %274 : vector<8x128xf32>
    %281 = vector.extract_strided_slice %279 {offsets = [0, 0], sizes = [8, 32], strides = [1, 1]} : vector<8x128xf32> to vector<8x32xf32>
    %282 = vector.extract_strided_slice %279 {offsets = [0, 32], sizes = [8, 32], strides = [1, 1]} : vector<8x128xf32> to vector<8x32xf32>
    %283 = vector.extract_strided_slice %280 {offsets = [0, 64], sizes = [8, 32], strides = [1, 1]} : vector<8x128xf32> to vector<8x32xf32>
    %284 = vector.extract_strided_slice %279 {offsets = [0, 96], sizes = [8, 32], strides = [1, 1]} : vector<8x128xf32> to vector<8x32xf32>
    %285 = arith.mulf %282, %248 : vector<8x32xf32>
    %286 = arith.mulf %281, %283 : vector<8x32xf32>
    %287 = arith.addf %285, %286 : vector<8x32xf32>
    %288 = math.tanh %287 : vector<8x32xf32>
    %289 = arith.mulf %284, %288 : vector<8x32xf32>
    %c48_79 = arith.constant 48 : index
    %c0_80 = arith.constant 0 : index
    %290 = vector.load %arg16[%c48_79, %c0_80] : memref<64x32xf32, #tpu.memory_space<vmem>>, vector<8x32xf32>
    tpu.vector_store %arg16[%c48_79, %c0_80], %289 {strides = array<i32>} : memref<64x32xf32, #tpu.memory_space<vmem>>, vector<8x32xf32>,
    %cst_81 = arith.constant dense<0.000000e+00> : vector<8x128xf32>
    %291 = tpu.matmul %289, %12, %cst_81 {dimension_numbers = #tpu.dot_dimension_numbers<[1], [0], [0], [1], [0, 0, 1, 1], [], []>} : vector<8x32xf32>, vector<32x128xf32>, vector<8x128xf32> -> vector<8x128xf32>
    %c56 = arith.constant 56 : index
    %c0_82 = arith.constant 0 : index
    %292 = vector.load %arg15[%c56, %c0_82] : memref<64x128xf32, #tpu.memory_space<vmem>>, vector<8x128xf32>
    %cst_83 = arith.constant dense<0.000000e+00> : vector<8x128xf32>
    %293 = tpu.matmul %270, %10, %cst_83 {dimension_numbers = #tpu.dot_dimension_numbers<[1], [0], [0], [1], [0, 0, 1, 1], [], []>} : vector<8x32xf32>, vector<32x128xf32>, vector<8x128xf32> -> vector<8x128xf32>
    %294 = arith.addf %292, %293 : vector<8x128xf32>
    %295 = arith.negf %294 : vector<8x128xf32>
    %296 = math.exp %295 : vector<8x128xf32>
    %cst_84 = arith.constant 1.000000e+00 : f32
    %297 = vector.broadcast %cst_84 : f32 to vector<8x128xf32>
    %298 = arith.addf %297, %296 : vector<8x128xf32>
    %299 = arith.divf %297, %298 : vector<8x128xf32>
    %300 = math.tanh %294 : vector<8x128xf32>
    %301 = vector.extract_strided_slice %299 {offsets = [0, 0], sizes = [8, 32], strides = [1, 1]} : vector<8x128xf32> to vector<8x32xf32>
    %302 = vector.extract_strided_slice %299 {offsets = [0, 32], sizes = [8, 32], strides = [1, 1]} : vector<8x128xf32> to vector<8x32xf32>
    %303 = vector.extract_strided_slice %300 {offsets = [0, 64], sizes = [8, 32], strides = [1, 1]} : vector<8x128xf32> to vector<8x32xf32>
    %304 = vector.extract_strided_slice %299 {offsets = [0, 96], sizes = [8, 32], strides = [1, 1]} : vector<8x128xf32> to vector<8x32xf32>
    %305 = arith.mulf %302, %268 : vector<8x32xf32>
    %306 = arith.mulf %301, %303 : vector<8x32xf32>
    %307 = arith.addf %305, %306 : vector<8x32xf32>
    %308 = math.tanh %307 : vector<8x32xf32>
    %309 = arith.mulf %304, %308 : vector<8x32xf32>
    %cst_85 = arith.constant dense<0.000000e+00> : vector<8x128xf32>
    %310 = tpu.matmul %309, %11, %cst_85 {dimension_numbers = #tpu.dot_dimension_numbers<[1], [0], [0], [1], [0, 0, 1, 1], [], []>} : vector<8x32xf32>, vector<32x128xf32>, vector<8x128xf32> -> vector<8x128xf32>
    %311 = arith.addf %310, %291 : vector<8x128xf32>
    %312 = vector.broadcast %13 : vector<1x128xf32> to vector<8x128xf32>
    %313 = arith.addf %311, %312 : vector<8x128xf32>
    %314 = arith.negf %313 : vector<8x128xf32>
    %315 = math.exp %314 : vector<8x128xf32>
    %cst_86 = arith.constant 1.000000e+00 : f32
    %316 = vector.broadcast %cst_86 : f32 to vector<8x128xf32>
    %317 = arith.addf %316, %315 : vector<8x128xf32>
    %318 = arith.divf %316, %317 : vector<8x128xf32>
    %319 = math.tanh %313 : vector<8x128xf32>
    %320 = vector.extract_strided_slice %318 {offsets = [0, 0], sizes = [8, 32], strides = [1, 1]} : vector<8x128xf32> to vector<8x32xf32>
    %321 = vector.extract_strided_slice %318 {offsets = [0, 32], sizes = [8, 32], strides = [1, 1]} : vector<8x128xf32> to vector<8x32xf32>
    %322 = vector.extract_strided_slice %319 {offsets = [0, 64], sizes = [8, 32], strides = [1, 1]} : vector<8x128xf32> to vector<8x32xf32>
    %323 = vector.extract_strided_slice %318 {offsets = [0, 96], sizes = [8, 32], strides = [1, 1]} : vector<8x128xf32> to vector<8x32xf32>
    %324 = arith.mulf %321, %287 : vector<8x32xf32>
    %325 = arith.mulf %320, %322 : vector<8x32xf32>
    %326 = arith.addf %324, %325 : vector<8x32xf32>
    %327 = math.tanh %326 : vector<8x32xf32>
    %328 = arith.mulf %323, %327 : vector<8x32xf32>
    %c56_87 = arith.constant 56 : index
    %c0_88 = arith.constant 0 : index
    %329 = vector.load %arg16[%c56_87, %c0_88] : memref<64x32xf32, #tpu.memory_space<vmem>>, vector<8x32xf32>
    tpu.vector_store %arg16[%c56_87, %c0_88], %328 {strides = array<i32>} : memref<64x32xf32, #tpu.memory_space<vmem>>, vector<8x32xf32>,
    %c0_89 = arith.constant 0 : index
    %c0_90 = arith.constant 0 : index
    %330 = vector.load %arg11[%c0_89, %c0_90] : memref<8x32xf32, #tpu.memory_space<vmem>>, vector<8x32xf32>
    tpu.vector_store %arg11[%c0_89, %c0_90], %309 {strides = array<i32>} : memref<8x32xf32, #tpu.memory_space<vmem>>, vector<8x32xf32>,
    %c0_91 = arith.constant 0 : index
    %c0_92 = arith.constant 0 : index
    %331 = vector.load %arg12[%c0_91, %c0_92] : memref<8x32xf32, #tpu.memory_space<vmem>>, vector<8x32xf32>
    tpu.vector_store %arg12[%c0_91, %c0_92], %307 {strides = array<i32>} : memref<8x32xf32, #tpu.memory_space<vmem>>, vector<8x32xf32>,
    %c0_93 = arith.constant 0 : index
    %c0_94 = arith.constant 0 : index
    %332 = vector.load %arg13[%c0_93, %c0_94] : memref<8x32xf32, #tpu.memory_space<vmem>>, vector<8x32xf32>
    tpu.vector_store %arg13[%c0_93, %c0_94], %328 {strides = array<i32>} : memref<8x32xf32, #tpu.memory_space<vmem>>, vector<8x32xf32>,
    %c0_95 = arith.constant 0 : index
    %c0_96 = arith.constant 0 : index
    %333 = vector.load %arg14[%c0_95, %c0_96] : memref<8x32xf32, #tpu.memory_space<vmem>>, vector<8x32xf32>
    tpu.vector_store %arg14[%c0_95, %c0_96], %326 {strides = array<i32>} : memref<8x32xf32, #tpu.memory_space<vmem>>, vector<8x32xf32>,
    %c0_97 = arith.constant 0 : index
    %c0_98 = arith.constant 0 : index
    %334 = vector.load %arg16[%c0_97, %c0_98] : memref<64x32xf32, #tpu.memory_space<vmem>>, vector<64x32xf32>
    %c0_99 = arith.constant 0 : index
    %c0_100 = arith.constant 0 : index
    %335 = vector.load %arg8[%c0_99, %c0_100] : memref<32x8xf32, #tpu.memory_space<vmem>>, vector<32x8xf32>
    %cst_101 = arith.constant dense<0.000000e+00> : vector<64x8xf32>
    %336 = tpu.matmul %334, %335, %cst_101 {dimension_numbers = #tpu.dot_dimension_numbers<[1], [0], [0], [1], [0, 0, 1, 1], [], []>} : vector<64x32xf32>, vector<32x8xf32>, vector<64x8xf32> -> vector<64x8xf32>
    %c0_102 = arith.constant 0 : index
    %c0_103 = arith.constant 0 : index
    %337 = vector.load %arg9[%c0_102, %c0_103] : memref<1x8xf32, #tpu.memory_space<vmem>>, vector<1x8xf32>
    %338 = vector.broadcast %337 : vector<1x8xf32> to vector<64x8xf32>
    %339 = arith.addf %336, %338 : vector<64x8xf32>
    %c0_104 = arith.constant 0 : index
    %c0_105 = arith.constant 0 : index
    %340 = vector.load %arg10[%c0_104, %c0_105] : memref<64x8xf32, #tpu.memory_space<vmem>>, vector<64x8xf32>
    tpu.vector_store %arg10[%c0_104, %c0_105], %339 {strides = array<i32>} : memref<64x8xf32, #tpu.memory_space<vmem>>, vector<64x8xf32>,
    return
  }
  func.func @transform_0(%arg0: i32) -> (i32, i32) {
    %c0_i32 = arith.constant 0 : i32
    %c0_i32_0 = arith.constant 0 : i32
    return %arg0, %c0_i32 : i32, i32
  }
  func.func @transform_1(%arg0: i32) -> (i32, i32) {
    %c0_i32 = arith.constant 0 : i32
    %c0_i32_0 = arith.constant 0 : i32
    %c0_i32_1 = arith.constant 0 : i32
    return %c0_i32, %c0_i32_0 : i32, i32
  }
  func.func @transform_2(%arg0: i32) -> (i32, i32) {
    %c0_i32 = arith.constant 0 : i32
    %c0_i32_0 = arith.constant 0 : i32
    %c0_i32_1 = arith.constant 0 : i32
    return %c0_i32, %c0_i32_0 : i32, i32
  }
  func.func @transform_3(%arg0: i32) -> (i32, i32) {
    %c0_i32 = arith.constant 0 : i32
    %c0_i32_0 = arith.constant 0 : i32
    %c0_i32_1 = arith.constant 0 : i32
    return %c0_i32, %c0_i32_0 : i32, i32
  }
  func.func @transform_4(%arg0: i32) -> (i32, i32) {
    %c0_i32 = arith.constant 0 : i32
    %c0_i32_0 = arith.constant 0 : i32
    %c0_i32_1 = arith.constant 0 : i32
    return %c0_i32, %c0_i32_0 : i32, i32
  }
  func.func @transform_5(%arg0: i32) -> (i32, i32) {
    %c0_i32 = arith.constant 0 : i32
    %c0_i32_0 = arith.constant 0 : i32
    %c0_i32_1 = arith.constant 0 : i32
    return %c0_i32, %c0_i32_0 : i32, i32
  }
  func.func @transform_6(%arg0: i32) -> (i32, i32) {
    %c0_i32 = arith.constant 0 : i32
    %c0_i32_0 = arith.constant 0 : i32
    %c0_i32_1 = arith.constant 0 : i32
    return %c0_i32, %c0_i32_0 : i32, i32
  }
  func.func @transform_7(%arg0: i32) -> (i32, i32) {
    %c0_i32 = arith.constant 0 : i32
    %c0_i32_0 = arith.constant 0 : i32
    %c0_i32_1 = arith.constant 0 : i32
    return %c0_i32, %c0_i32_0 : i32, i32
  }
  func.func @transform_8(%arg0: i32) -> (i32, i32) {
    %c0_i32 = arith.constant 0 : i32
    %c0_i32_0 = arith.constant 0 : i32
    %c0_i32_1 = arith.constant 0 : i32
    return %c0_i32, %c0_i32_0 : i32, i32
  }
  func.func @transform_9(%arg0: i32) -> (i32, i32) {
    %c0_i32 = arith.constant 0 : i32
    %c0_i32_0 = arith.constant 0 : i32
    return %arg0, %c0_i32 : i32, i32
  }
}

</mosaic_0001>

<llo_original>
// kernel: generator_forward.1
$region0: #{generator_forward.1}
  #allocation0 [shape = 'u32[]', space=smem, size = 0x4, offset = 0x4, fixed_abs, tag = 'smem constant byte address 0x4 - core index']
  #allocation1 [shape = 'u32[72,128]{1,0:T(1,128)}', space=vmem, size = 0x9000, scoped, tag = 'internal scratch']
  #allocation2 [shape = 'f32[8,32]{1,0:T(8,128)}', space=vmem, size = 0x1000, scoped, tag = 'scratch operand']
  #allocation3 [shape = 'f32[8,32]{1,0:T(8,128)}', space=vmem, size = 0x1000, scoped, tag = 'scratch operand']
  #allocation4 [shape = 'f32[8,32]{1,0:T(8,128)}', space=vmem, size = 0x1000, scoped, tag = 'scratch operand']
  #allocation5 [shape = 'f32[8,32]{1,0:T(8,128)}', space=vmem, size = 0x1000, scoped, tag = 'scratch operand']
  #allocation6 [shape = 'f32[64,128]{1,0:T(8,128)}', space=vmem, size = 0x8000, scoped, tag = 'scratch operand']
  #allocation7 [shape = 'f32[64,32]{1,0:T(8,128)}', space=vmem, size = 0x8000, scoped, tag = 'scratch operand']
  %s0 = inlined_call_operand.vmem [shape: f32[64,16], index: 0, kind: input, shape index: {}]
  %s1 = inlined_call_operand.vmem [shape: f32[16,128], index: 1, kind: input, shape index: {}]
  %s2 = inlined_call_operand.vmem [shape: f32[32,128], index: 2, kind: input, shape index: {}]
  %s3 = inlined_call_operand.vmem [shape: f32[1,128], index: 3, kind: input, shape index: {}]
  %s4 = inlined_call_operand.vmem [shape: f32[32,128], index: 4, kind: input, shape index: {}]
  %s5 = inlined_call_operand.vmem [shape: f32[32,128], index: 5, kind: input, shape index: {}]
  %s6 = inlined_call_operand.vmem [shape: f32[1,128], index: 6, kind: input, shape index: {}]
  %s7 = inlined_call_operand.vmem [shape: f32[32,8], index: 7, kind: input, shape index: {}]
  %s8 = inlined_call_operand.vmem [shape: f32[1,8], index: 8, kind: input, shape index: {}]
  %s9 = inlined_call_operand.vmem [shape: f32[64,8], index: 9, kind: output, shape index: {}]
  %s10 = sld [smem:[#allocation0]]
  $region50: #{generator_forward.1} parent=0
    _
  %s12 = ssub.s32 1, %s10
  %s13 = scalar_select 0, %s12, %s10
  // Predicated region
  $region2: #{generator_forward.1} parent=0 // pred_check
    _
  $region3: #{generator_forward.1} parent=0 // pred_check_branch
    %15 = sbr.rel (0) target = $region5
  $region4: #{generator_forward.1} parent=0 // pred_region
    _
  $region5: #{generator_forward.1} parent=0 // pred_fallthru
    _
  // Predicated region
  $region6: #{generator_forward.1} parent=0 // pred_check
    _
  $region7: #{generator_forward.1} parent=0 // pred_check_branch
    %17 = sbr.rel (0) target = $region9
  $region8: #{generator_forward.1} parent=0 // pred_region
    _
  $region9: #{generator_forward.1} parent=0 // pred_fallthru
    _
  // Predicated region
  $region10: #{generator_forward.1} parent=0 // pred_check
    _
  $region11: #{generator_forward.1} parent=0 // pred_check_branch
    %19 = sbr.rel (0) target = $region13
  $region12: #{generator_forward.1} parent=0 // pred_region
    _
  $region13: #{generator_forward.1} parent=0 // pred_fallthru
    _
  // Predicated region
  $region14: #{generator_forward.1} parent=0 // pred_check
    _
  $region15: #{generator_forward.1} parent=0 // pred_check_branch
    %21 = sbr.rel (0) target = $region17
  $region16: #{generator_forward.1} parent=0 // pred_region
    _
  $region17: #{generator_forward.1} parent=0 // pred_fallthru
    _
  // Predicated region
  $region18: #{generator_forward.1} parent=0 // pred_check
    _
  $region19: #{generator_forward.1} parent=0 // pred_check_branch
    %23 = sbr.rel (0) target = $region21
  $region20: #{generator_forward.1} parent=0 // pred_region
    _
  $region21: #{generator_forward.1} parent=0 // pred_fallthru
    _
  // Predicated region
  $region22: #{generator_forward.1} parent=0 // pred_check
    _
  $region23: #{generator_forward.1} parent=0 // pred_check_branch
    %25 = sbr.rel (0) target = $region25
  $region24: #{generator_forward.1} parent=0 // pred_region
    _
  $region25: #{generator_forward.1} parent=0 // pred_fallthru
    _
  // Predicated region
  $region26: #{generator_forward.1} parent=0 // pred_check
    _
  $region27: #{generator_forward.1} parent=0 // pred_check_branch
    %27 = sbr.rel (0) target = $region29
  $region28: #{generator_forward.1} parent=0 // pred_region
    _
  $region29: #{generator_forward.1} parent=0 // pred_fallthru
    _
  // Predicated region
  $region30: #{generator_forward.1} parent=0 // pred_check
    _
  $region31: #{generator_forward.1} parent=0 // pred_check_branch
    %29 = sbr.rel (0) target = $region33
  $region32: #{generator_forward.1} parent=0 // pred_region
    _
  $region33: #{generator_forward.1} parent=0 // pred_fallthru
    _
  // Predicated region
  $region34: #{generator_forward.1} parent=0 // pred_check
    _
  $region35: #{generator_forward.1} parent=0 // pred_check_branch
    %31 = sbr.rel (0) target = $region37
  $region36: #{generator_forward.1} parent=0 // pred_region
    _
  $region37: #{generator_forward.1} parent=0 // pred_fallthru
    _
  %p32 = scmp.eq.s32.totalorder 0, 0
  // Predicated region
  $region38: #{generator_forward.1} parent=0 // pred_check
    %p33 = pneg %p32
  $region39: #{generator_forward.1} parent=0 // pred_check_branch
    %35 = sbr.rel (%p33) target = $region41
  $region40: #{generator_forward.1} parent=0 // pred_region
    %vm36 = vcmask 261120
    %37 = vst.msk [vmem:[#allocation2] sm:$0xff] %vm36, 0.0
    %38 = vst.msk [vmem:[#allocation3] sm:$0xff] %vm36, 0.0
    %39 = vst.msk [vmem:[#allocation4] sm:$0xff] %vm36, 0.0
    %40 = vst.msk [vmem:[#allocation5] sm:$0xff] %vm36, 0.0
  $region41: #{generator_forward.1} parent=0 // pred_fallthru
    _
  %v41 = vld [vmem:[%s0] sm:$0xff]
  %v42 = vld [vmem:[%s0 + $0x8] sm:$0xff]
  %v43 = vld [vmem:[%s0 + $0x10] sm:$0xff]
  %v44 = vld [vmem:[%s0 + $0x18] sm:$0xff]
  %v45 = vld [vmem:[%s0 + $0x20] sm:$0xff]
  %v46 = vld [vmem:[%s0 + $0x28] sm:$0xff]
  %v47 = vld [vmem:[%s0 + $0x30] sm:$0xff]
  %v48 = vld [vmem:[%s0 + $0x38] sm:$0xff]
  %v49 = vld [vmem:[%s1] sm:$0xff]
  %v50 = vld [vmem:[%s1 + $0x8] sm:$0xff]
  %v51 = vld [vmem:[%s3] sm:$0x1]
  %v53 = vperm.slane %v51, 0
  %vm55 = vcmask 130048
  %v57 = vsel %vm55, %v41, 0
  %v60 = vsel %vm55, %v42, 0
  %v63 = vsel %vm55, %v43, 0
  %v66 = vsel %vm55, %v44, 0
  %v69 = vsel %vm55, %v45, 0
  %v72 = vsel %vm55, %v46, 0
  %v75 = vsel %vm55, %v47, 0
  %v78 = vsel %vm55, %v48, 0
  %80 = vmatpush.msra.mxu0 0.0
  %81 = vmatpush.msra.mxu0 0.0
  %82 = vmatpush.msra.mxu0 0.0
  %83 = vmatpush.msra.mxu0 0.0
  %84 = vmatpush.msra.mxu0 0.0
  %85 = vmatpush.msra.mxu0 0.0
  %86 = vmatpush.msra.mxu0 0.0
  %87 = vmatpush.msra.mxu0 0.0
  %88 = vmatpush.msra.mxu0 0.0
  %89 = vmatpush.msra.mxu0 0.0
  %90 = vmatpush.msra.mxu0 0.0
  %91 = vmatpush.msra.mxu0 0.0
  %92 = vmatpush.msra.mxu0 0.0
  %93 = vmatpush.msra.mxu0 0.0
  %94 = vmatpush.msra.mxu0 %v50
  %95 = vmatpush.msra.mxu0 %v49
  %96 = vmatmul.f32.gmra.mxu0 %v57
  %v97 = vpop.f32.mrf.mxu0
  %v98 = vadd.f32 %v53, %v97
  %99 = vmatmul.f32.gmra.mxu0 %v60
  %v100 = vpop.f32.mrf.mxu0
  %v101 = vadd.f32 %v53, %v100
  %102 = vmatmul.f32.gmra.mxu0 %v63
  %v103 = vpop.f32.mrf.mxu0
  %v104 = vadd.f32 %v53, %v103
  %105 = vmatmul.f32.gmra.mxu0 %v66
  %v106 = vpop.f32.mrf.mxu0
  %v107 = vadd.f32 %v53, %v106
  %108 = vmatmul.f32.gmra.mxu0 %v69
  %v109 = vpop.f32.mrf.mxu0
  %v110 = vadd.f32 %v53, %v109
  %111 = vmatmul.f32.gmra.mxu0 %v72
  %v112 = vpop.f32.mrf.mxu0
  %v113 = vadd.f32 %v53, %v112
  %114 = vmatmul.f32.gmra.mxu0 %v75
  %v115 = vpop.f32.mrf.mxu0
  %v116 = vadd.f32 %v53, %v115
  %117 = vmatmul.f32.gmra.mxu0 %v78
  %v118 = vpop.f32.mrf.mxu0
  %v119 = vadd.f32 %v53, %v118
  %120 = vdwg.mxu0
  %121 = vst [vmem:[#allocation6] sm:$0xff] %v98
  %122 = vst [vmem:[#allocation6 + $0x8] sm:$0xff] %v101
  %123 = vst [vmem:[#allocation6 + $0x10] sm:$0xff] %v104
  %124 = vst [vmem:[#allocation6 + $0x18] sm:$0xff] %v107
  %125 = vst [vmem:[#allocation6 + $0x20] sm:$0xff] %v110
  %126 = vst [vmem:[#allocation6 + $0x28] sm:$0xff] %v113
  %127 = vst [vmem:[#allocation6 + $0x30] sm:$0xff] %v116
  %128 = vst [vmem:[#allocation6 + $0x38] sm:$0xff] %v119
  %v129 = vld [vmem:[%s2] sm:$0xff]
  %v130 = vld [vmem:[%s2 + $0x8] sm:$0xff]
  %v131 = vld [vmem:[%s2 + $0x10] sm:$0xff]
  %v132 = vld [vmem:[%s2 + $0x18] sm:$0xff]
  %v133 = vld [vmem:[%s4] sm:$0xff]
  %v134 = vld [vmem:[%s4 + $0x8] sm:$0xff]
  %v135 = vld [vmem:[%s4 + $0x10] sm:$0xff]
  %v136 = vld [vmem:[%s4 + $0x18] sm:$0xff]
  %v137 = vld [vmem:[%s5] sm:$0xff]
  %v138 = vld [vmem:[%s5 + $0x8] sm:$0xff]
  %v139 = vld [vmem:[%s5 + $0x10] sm:$0xff]
  %v140 = vld [vmem:[%s5 + $0x18] sm:$0xff]
  %v141 = vld [vmem:[%s6] sm:$0x1]
  %v142 = vld [vmem:[#allocation2] sm:$0xff]
  %v143 = vld [vmem:[#allocation3] sm:$0xff]
  %v144 = vld [vmem:[#allocation4] sm:$0xff]
  %v145 = vld [vmem:[#allocation5] sm:$0xff]
  %vm146 = vcmask 261120
  %v148 = vsel %vm146, %v144, 0
  %150 = vmatpush.msra.mxu0 0.0
  %151 = vmatpush.msra.mxu0 0.0
  %152 = vmatpush.msra.mxu0 0.0
  %153 = vmatpush.msra.mxu0 0.0
  %154 = vmatpush.msra.mxu0 0.0
  %155 = vmatpush.msra.mxu0 0.0
  %156 = vmatpush.msra.mxu0 0.0
  %157 = vmatpush.msra.mxu0 0.0
  %158 = vmatpush.msra.mxu0 0.0
  %159 = vmatpush.msra.mxu0 0.0
  %160 = vmatpush.msra.mxu0 0.0
  %161 = vmatpush.msra.mxu0 0.0
  %162 = vmatpush.msra.mxu0 %v140
  %163 = vmatpush.msra.mxu0 %v139
  %164 = vmatpush.msra.mxu0 %v138
  %165 = vmatpush.msra.mxu0 %v137
  %166 = vmatmul.f32.gmra.mxu0 %v148
  %v167 = vpop.f32.mrf.mxu0
  %v168 = vadd.f32 0.0, %v167
  %169 = vdwg.mxu0
  %v170 = vld [vmem:[#allocation6] sm:$0xff]
  %v172 = vsel %vm146, %v142, 0
  %174 = vmatpush.msra.mxu0 0.0
  %175 = vmatpush.msra.mxu0 0.0
  %176 = vmatpush.msra.mxu0 0.0
  %177 = vmatpush.msra.mxu0 0.0
  %178 = vmatpush.msra.mxu0 0.0
  %179 = vmatpush.msra.mxu0 0.0
  %180 = vmatpush.msra.mxu0 0.0
  %181 = vmatpush.msra.mxu0 0.0
  %182 = vmatpush.msra.mxu0 0.0
  %183 = vmatpush.msra.mxu0 0.0
  %184 = vmatpush.msra.mxu0 0.0
  %185 = vmatpush.msra.mxu0 0.0
  %186 = vmatpush.msra.mxu0 %v132
  %187 = vmatpush.msra.mxu0 %v131
  %188 = vmatpush.msra.mxu0 %v130
  %189 = vmatpush.msra.mxu0 %v129
  %190 = vmatmul.f32.gmra.mxu0 %v172
  %v191 = vpop.f32.mrf.mxu0
  %v192 = vadd.f32 0.0, %v191
  %193 = vdwg.mxu0
  %v194 = vadd.f32 %v170, %v192
  %v195 = vxor.u32 %v194, 2147483648
  %v196 = vmul.f32 %v195, 1.442695
  %v197 = vpow.pop %v196
  %v198 = vadd.f32 %v197, 1.0
  %v199 = vrcp.pop %v198
  %v200 = vmul.f32 %v198, %v199
  %v201 = vsub.f32 1.0, %v200
  %v202 = vmul.f32 %v199, %v201
  %v203 = vadd.f32 %v199, %v202
  %vm204 = vweird.f32 %v198
  %vm205 = vweird.f32 %v199
  %vm206 = vmor %vm204, %vm205
  %v207 = vsel %vm206, %v199, %v203
  %v208 = vand.u32 2147483647, %v198
  %vm209 = vcmp.eq.f32.partialorder %v208, 8.507059e+37
  %v210 = vand.u32 %v198, 2147483648
  %v211 = vor.u32 1.1754944e-38, %v210
  %v212 = vsel %vm209, %v211, %v207
  %v213 = vmul.f32 1.0, %v212
  %v214 = vtanh.pop %v194
  %216 = vrot.lane.b32.xlu0 %v143, 32
  %v217 = vpop.permute.xlu0 %216
  %v219 = vmul.f32 %v213, %v217
  %221 = vrot.lane.b32.xlu0 %v214, 64
  %v222 = vpop.permute.xlu0 %221
  %v224 = vmul.f32 %v213, %v222
  %226 = vrot.lane.b32.xlu0 %v224, 32
  %v227 = vpop.permute.xlu0 %226
  %v229 = vadd.f32 %v219, %v227
  %v230 = vtanh.pop %v229
  %232 = vrot.lane.b32.xlu0 %v230, 64
  %v233 = vpop.permute.xlu0 %232
  %v235 = vmul.f32 %v213, %v233
  %237 = vrot.lane.b32.xlu0 %v235, 32
  %v238 = vpop.permute.xlu0 %237
  %v239 = vsel %vm146, %v238, 0
  %241 = vmatpush.msra.mxu0 0.0
  %242 = vmatpush.msra.mxu0 0.0
  %243 = vmatpush.msra.mxu0 0.0
  %244 = vmatpush.msra.mxu0 0.0
  %245 = vmatpush.msra.mxu0 0.0
  %246 = vmatpush.msra.mxu0 0.0
  %247 = vmatpush.msra.mxu0 0.0
  %248 = vmatpush.msra.mxu0 0.0
  %249 = vmatpush.msra.mxu0 0.0
  %250 = vmatpush.msra.mxu0 0.0
  %251 = vmatpush.msra.mxu0 0.0
  %252 = vmatpush.msra.mxu0 0.0
  %253 = vmatpush.msra.mxu0 %v136
  %254 = vmatpush.msra.mxu0 %v135
  %255 = vmatpush.msra.mxu0 %v134
  %256 = vmatpush.msra.mxu0 %v133
  %257 = vmatmul.f32.gmra.mxu0 %v239
  %v258 = vpop.f32.mrf.mxu0
  %v259 = vadd.f32 %v168, %v258
  %260 = vdwg.mxu0
  %v262 = vperm.slane %v141, 0
  %v264 = vadd.f32 %v259, %v262
  %v265 = vxor.u32 %v264, 2147483648
  %v266 = vmul.f32 %v265, 1.442695
  %v267 = vpow.pop %v266
  %v268 = vadd.f32 %v267, 1.0
  %v269 = vrcp.pop %v268
  %v270 = vmul.f32 %v268, %v269
  %v271 = vsub.f32 1.0, %v270
  %v272 = vmul.f32 %v269, %v271
  %v273 = vadd.f32 %v269, %v272
  %vm274 = vweird.f32 %v268
  %vm275 = vweird.f32 %v269
  %vm276 = vmor %vm274, %vm275
  %v277 = vsel %vm276, %v269, %v273
  %v278 = vand.u32 2147483647, %v268
  %vm279 = vcmp.eq.f32.partialorder %v278, 8.507059e+37
  %v280 = vand.u32 %v268, 2147483648
  %v281 = vor.u32 1.1754944e-38, %v280
  %v282 = vsel %vm279, %v281, %v277
  %v283 = vmul.f32 1.0, %v282
  %v284 = vtanh.pop %v264
  %286 = vrot.lane.b32.xlu0 %v145, 32
  %v287 = vpop.permute.xlu0 %286
  %v289 = vmul.f32 %v283, %v287
  %291 = vrot.lane.b32.xlu0 %v284, 64
  %v292 = vpop.permute.xlu0 %291
  %v294 = vmul.f32 %v283, %v292
  %296 = vrot.lane.b32.xlu0 %v294, 32
  %v297 = vpop.permute.xlu0 %296
  %v299 = vadd.f32 %v289, %v297
  %v300 = vtanh.pop %v299
  %302 = vrot.lane.b32.xlu0 %v300, 64
  %v303 = vpop.permute.xlu0 %302
  %v305 = vmul.f32 %v283, %v303
  %307 = vrot.lane.b32.xlu0 %v305, 32
  %v308 = vpop.permute.xlu0 %307
  %310 = vst.msk [vmem:[#allocation7] sm:$0xff] %vm146, %v308
  %v311 = vsel %vm146, %v308, 0
  %313 = vmatpush.msra.mxu0 0.0
  %314 = vmatpush.msra.mxu0 0.0
  %315 = vmatpush.msra.mxu0 0.0
  %316 = vmatpush.msra.mxu0 0.0
  %317 = vmatpush.msra.mxu0 0.0
  %318 = vmatpush.msra.mxu0 0.0
  %319 = vmatpush.msra.mxu0 0.0
  %320 = vmatpush.msra.mxu0 0.0
  %321 = vmatpush.msra.mxu0 0.0
  %322 = vmatpush.msra.mxu0 0.0
  %323 = vmatpush.msra.mxu0 0.0
  %324 = vmatpush.msra.mxu0 0.0
  %325 = vmatpush.msra.mxu0 %v140
  %326 = vmatpush.msra.mxu0 %v139
  %327 = vmatpush.msra.mxu0 %v138
  %328 = vmatpush.msra.mxu0 %v137
  %329 = vmatmul.f32.gmra.mxu0 %v311
  %v330 = vpop.f32.mrf.mxu0
  %v331 = vadd.f32 0.0, %v330
  %332 = vdwg.mxu0
  %v333 = vld [vmem:[#allocation6 + $0x8] sm:$0xff]
  %334 = vmatpush.msra.mxu0 0.0
  %335 = vmatpush.msra.mxu0 0.0
  %336 = vmatpush.msra.mxu0 0.0
  %337 = vmatpush.msra.mxu0 0.0
  %338 = vmatpush.msra.mxu0 0.0
  %339 = vmatpush.msra.mxu0 0.0
  %340 = vmatpush.msra.mxu0 0.0
  %341 = vmatpush.msra.mxu0 0.0
  %342 = vmatpush.msra.mxu0 0.0
  %343 = vmatpush.msra.mxu0 0.0
  %344 = vmatpush.msra.mxu0 0.0
  %345 = vmatpush.msra.mxu0 0.0
  %346 = vmatpush.msra.mxu0 %v132
  %347 = vmatpush.msra.mxu0 %v131
  %348 = vmatpush.msra.mxu0 %v130
  %349 = vmatpush.msra.mxu0 %v129
  %350 = vmatmul.f32.gmra.mxu0 %v239
  %v351 = vpop.f32.mrf.mxu0
  %v352 = vadd.f32 0.0, %v351
  %353 = vdwg.mxu0
  %v354 = vadd.f32 %v333, %v352
  %v355 = vxor.u32 %v354, 2147483648
  %v356 = vmul.f32 %v355, 1.442695
  %v357 = vpow.pop %v356
  %v358 = vadd.f32 %v357, 1.0
  %v359 = vrcp.pop %v358
  %v360 = vmul.f32 %v358, %v359
  %v361 = vsub.f32 1.0, %v360
  %v362 = vmul.f32 %v359, %v361
  %v363 = vadd.f32 %v359, %v362
  %vm364 = vweird.f32 %v358
  %vm365 = vweird.f32 %v359
  %vm366 = vmor %vm364, %vm365
  %v367 = vsel %vm366, %v359, %v363
  %v368 = vand.u32 2147483647, %v358
  %vm369 = vcmp.eq.f32.partialorder %v368, 8.507059e+37
  %v370 = vand.u32 %v358, 2147483648
  %v371 = vor.u32 1.1754944e-38, %v370
  %v372 = vsel %vm369, %v371, %v367
  %v373 = vmul.f32 1.0, %v372
  %v374 = vtanh.pop %v354
  %v375 = vmul.f32 %v373, %v229
  %377 = vrot.lane.b32.xlu0 %v374, 64
  %v378 = vpop.permute.xlu0 %377
  %v380 = vmul.f32 %v373, %v378
  %382 = vrot.lane.b32.xlu0 %v380, 32
  %v383 = vpop.permute.xlu0 %382
  %v385 = vadd.f32 %v375, %v383
  %v386 = vtanh.pop %v385
  %388 = vrot.lane.b32.xlu0 %v386, 64
  %v389 = vpop.permute.xlu0 %388
  %v391 = vmul.f32 %v373, %v389
  %393 = vrot.lane.b32.xlu0 %v391, 32
  %v394 = vpop.permute.xlu0 %393
  %v395 = vsel %vm146, %v394, 0
  %397 = vmatpush.msra.mxu0 0.0
  %398 = vmatpush.msra.mxu0 0.0
  %399 = vmatpush.msra.mxu0 0.0
  %400 = vmatpush.msra.mxu0 0.0
  %401 = vmatpush.msra.mxu0 0.0
  %402 = vmatpush.msra.mxu0 0.0
  %403 = vmatpush.msra.mxu0 0.0
  %404 = vmatpush.msra.mxu0 0.0
  %405 = vmatpush.msra.mxu0 0.0
  %406 = vmatpush.msra.mxu0 0.0
  %407 = vmatpush.msra.mxu0 0.0
  %408 = vmatpush.msra.mxu0 0.0
  %409 = vmatpush.msra.mxu0 %v136
  %410 = vmatpush.msra.mxu0 %v135
  %411 = vmatpush.msra.mxu0 %v134
  %412 = vmatpush.msra.mxu0 %v133
  %413 = vmatmul.f32.gmra.mxu0 %v395
  %v414 = vpop.f32.mrf.mxu0
  %v415 = vadd.f32 %v331, %v414
  %416 = vdwg.mxu0
  %v417 = vadd.f32 %v415, %v262
  %v418 = vxor.u32 %v417, 2147483648
  %v419 = vmul.f32 %v418, 1.442695
  %v420 = vpow.pop %v419
  %v421 = vadd.f32 %v420, 1.0
  %v422 = vrcp.pop %v421
  %v423 = vmul.f32 %v421, %v422
  %v424 = vsub.f32 1.0, %v423
  %v425 = vmul.f32 %v422, %v424
  %v426 = vadd.f32 %v422, %v425
  %vm427 = vweird.f32 %v421
  %vm428 = vweird.f32 %v422
  %vm429 = vmor %vm427, %vm428
  %v430 = vsel %vm429, %v422, %v426
  %v431 = vand.u32 2147483647, %v421
  %vm432 = vcmp.eq.f32.partialorder %v431, 8.507059e+37
  %v433 = vand.u32 %v421, 2147483648
  %v434 = vor.u32 1.1754944e-38, %v433
  %v435 = vsel %vm432, %v434, %v430
  %v436 = vmul.f32 1.0, %v435
  %v437 = vtanh.pop %v417
  %v438 = vmul.f32 %v436, %v299
  %440 = vrot.lane.b32.xlu0 %v437, 64
  %v441 = vpop.permute.xlu0 %440
  %v443 = vmul.f32 %v436, %v441
  %445 = vrot.lane.b32.xlu0 %v443, 32
  %v446 = vpop.permute.xlu0 %445
  %v448 = vadd.f32 %v438, %v446
  %v449 = vtanh.pop %v448
  %451 = vrot.lane.b32.xlu0 %v449, 64
  %v452 = vpop.permute.xlu0 %451
  %v454 = vmul.f32 %v436, %v452
  %456 = vrot.lane.b32.xlu0 %v454, 32
  %v457 = vpop.permute.xlu0 %456
  %459 = vst.msk [vmem:[#allocation7 + $0x8] sm:$0xff] %vm146, %v457
  %v460 = vsel %vm146, %v457, 0
  %462 = vmatpush.msra.mxu0 0.0
  %463 = vmatpush.msra.mxu0 0.0
  %464 = vmatpush.msra.mxu0 0.0
  %465 = vmatpush.msra.mxu0 0.0
  %466 = vmatpush.msra.mxu0 0.0
  %467 = vmatpush.msra.mxu0 0.0
  %468 = vmatpush.msra.mxu0 0.0
  %469 = vmatpush.msra.mxu0 0.0
  %470 = vmatpush.msra.mxu0 0.0
  %471 = vmatpush.msra.mxu0 0.0
  %472 = vmatpush.msra.mxu0 0.0
  %473 = vmatpush.msra.mxu0 0.0
  %474 = vmatpush.msra.mxu0 %v140
  %475 = vmatpush.msra.mxu0 %v139
  %476 = vmatpush.msra.mxu0 %v138
  %477 = vmatpush.msra.mxu0 %v137
  %478 = vmatmul.f32.gmra.mxu0 %v460
  %v479 = vpop.f32.mrf.mxu0
  %v480 = vadd.f32 0.0, %v479
  %481 = vdwg.mxu0
  %v482 = vld [vmem:[#allocation6 + $0x10] sm:$0xff]
  %483 = vmatpush.msra.mxu0 0.0
  %484 = vmatpush.msra.mxu0 0.0
  %485 = vmatpush.msra.mxu0 0.0
  %486 = vmatpush.msra.mxu0 0.0
  %487 = vmatpush.msra.mxu0 0.0
  %488 = vmatpush.msra.mxu0 0.0
  %489 = vmatpush.msra.mxu0 0.0
  %490 = vmatpush.msra.mxu0 0.0
  %491 = vmatpush.msra.mxu0 0.0
  %492 = vmatpush.msra.mxu0 0.0
  %493 = vmatpush.msra.mxu0 0.0
  %494 = vmatpush.msra.mxu0 0.0
  %495 = vmatpush.msra.mxu0 %v132
  %496 = vmatpush.msra.mxu0 %v131
  %497 = vmatpush.msra.mxu0 %v130
  %498 = vmatpush.msra.mxu0 %v129
  %499 = vmatmul.f32.gmra.mxu0 %v395
  %v500 = vpop.f32.mrf.mxu0
  %v501 = vadd.f32 0.0, %v500
  %502 = vdwg.mxu0
  %v503 = vadd.f32 %v482, %v501
  %v504 = vxor.u32 %v503, 2147483648
  %v505 = vmul.f32 %v504, 1.442695
  %v506 = vpow.pop %v505
  %v507 = vadd.f32 %v506, 1.0
  %v508 = vrcp.pop %v507
  %v509 = vmul.f32 %v507, %v508
  %v510 = vsub.f32 1.0, %v509
  %v511 = vmul.f32 %v508, %v510
  %v512 = vadd.f32 %v508, %v511
  %vm513 = vweird.f32 %v507
  %vm514 = vweird.f32 %v508
  %vm515 = vmor %vm513, %vm514
  %v516 = vsel %vm515, %v508, %v512
  %v517 = vand.u32 2147483647, %v507
  %vm518 = vcmp.eq.f32.partialorder %v517, 8.507059e+37
  %v519 = vand.u32 %v507, 2147483648
  %v520 = vor.u32 1.1754944e-38, %v519
  %v521 = vsel %vm518, %v520, %v516
  %v522 = vmul.f32 1.0, %v521
  %v523 = vtanh.pop %v503
  %v524 = vmul.f32 %v522, %v385
  %526 = vrot.lane.b32.xlu0 %v523, 64
  %v527 = vpop.permute.xlu0 %526
  %v529 = vmul.f32 %v522, %v527
  %531 = vrot.lane.b32.xlu0 %v529, 32
  %v532 = vpop.permute.xlu0 %531
  %v534 = vadd.f32 %v524, %v532
  %v535 = vtanh.pop %v534
  %537 = vrot.lane.b32.xlu0 %v535, 64
  %v538 = vpop.permute.xlu0 %537
  %v540 = vmul.f32 %v522, %v538
  %542 = vrot.lane.b32.xlu0 %v540, 32
  %v543 = vpop.permute.xlu0 %542
  %v544 = vsel %vm146, %v543, 0
  %546 = vmatpush.msra.mxu0 0.0
  %547 = vmatpush.msra.mxu0 0.0
  %548 = vmatpush.msra.mxu0 0.0
  %549 = vmatpush.msra.mxu0 0.0
  %550 = vmatpush.msra.mxu0 0.0
  %551 = vmatpush.msra.mxu0 0.0
  %552 = vmatpush.msra.mxu0 0.0
  %553 = vmatpush.msra.mxu0 0.0
  %554 = vmatpush.msra.mxu0 0.0
  %555 = vmatpush.msra.mxu0 0.0
  %556 = vmatpush.msra.mxu0 0.0
  %557 = vmatpush.msra.mxu0 0.0
  %558 = vmatpush.msra.mxu0 %v136
  %559 = vmatpush.msra.mxu0 %v135
  %560 = vmatpush.msra.mxu0 %v134
  %561 = vmatpush.msra.mxu0 %v133
  %562 = vmatmul.f32.gmra.mxu0 %v544
  %v563 = vpop.f32.mrf.mxu0
  %v564 = vadd.f32 %v480, %v563
  %565 = vdwg.mxu0
  %v566 = vadd.f32 %v564, %v262
  %v567 = vxor.u32 %v566, 2147483648
  %v568 = vmul.f32 %v567, 1.442695
  %v569 = vpow.pop %v568
  %v570 = vadd.f32 %v569, 1.0
  %v571 = vrcp.pop %v570
  %v572 = vmul.f32 %v570, %v571
  %v573 = vsub.f32 1.0, %v572
  %v574 = vmul.f32 %v571, %v573
  %v575 = vadd.f32 %v571, %v574
  %vm576 = vweird.f32 %v570
  %vm577 = vweird.f32 %v571
  %vm578 = vmor %vm576, %vm577
  %v579 = vsel %vm578, %v571, %v575
  %v580 = vand.u32 2147483647, %v570
  %vm581 = vcmp.eq.f32.partialorder %v580, 8.507059e+37
  %v582 = vand.u32 %v570, 2147483648
  %v583 = vor.u32 1.1754944e-38, %v582
  %v584 = vsel %vm581, %v583, %v579
  %v585 = vmul.f32 1.0, %v584
  %v586 = vtanh.pop %v566
  %v587 = vmul.f32 %v585, %v448
  %589 = vrot.lane.b32.xlu0 %v586, 64
  %v590 = vpop.permute.xlu0 %589
  %v592 = vmul.f32 %v585, %v590
  %594 = vrot.lane.b32.xlu0 %v592, 32
  %v595 = vpop.permute.xlu0 %594
  %v597 = vadd.f32 %v587, %v595
  %v598 = vtanh.pop %v597
  %600 = vrot.lane.b32.xlu0 %v598, 64
  %v601 = vpop.permute.xlu0 %600
  %v603 = vmul.f32 %v585, %v601
  %605 = vrot.lane.b32.xlu0 %v603, 32
  %v606 = vpop.permute.xlu0 %605
  %608 = vst.msk [vmem:[#allocation7 + $0x10] sm:$0xff] %vm146, %v606
  %v609 = vsel %vm146, %v606, 0
  %611 = vmatpush.msra.mxu0 0.0
  %612 = vmatpush.msra.mxu0 0.0
  %613 = vmatpush.msra.mxu0 0.0
  %614 = vmatpush.msra.mxu0 0.0
  %615 = vmatpush.msra.mxu0 0.0
  %616 = vmatpush.msra.mxu0 0.0
  %617 = vmatpush.msra.mxu0 0.0
  %618 = vmatpush.msra.mxu0 0.0
  %619 = vmatpush.msra.mxu0 0.0
  %620 = vmatpush.msra.mxu0 0.0
  %621 = vmatpush.msra.mxu0 0.0
  %622 = vmatpush.msra.mxu0 0.0
  %623 = vmatpush.msra.mxu0 %v140
  %624 = vmatpush.msra.mxu0 %v139
  %625 = vmatpush.msra.mxu0 %v138
  %626 = vmatpush.msra.mxu0 %v137
  %627 = vmatmul.f32.gmra.mxu0 %v609
  %v628 = vpop.f32.mrf.mxu0
  %v629 = vadd.f32 0.0, %v628
  %630 = vdwg.mxu0
  %v631 = vld [vmem:[#allocation6 + $0x18] sm:$0xff]
  %632 = vmatpush.msra.mxu0 0.0
  %633 = vmatpush.msra.mxu0 0.0
  %634 = vmatpush.msra.mxu0 0.0
  %635 = vmatpush.msra.mxu0 0.0
  %636 = vmatpush.msra.mxu0 0.0
  %637 = vmatpush.msra.mxu0 0.0
  %638 = vmatpush.msra.mxu0 0.0
  %639 = vmatpush.msra.mxu0 0.0
  %640 = vmatpush.msra.mxu0 0.0
  %641 = vmatpush.msra.mxu0 0.0
  %642 = vmatpush.msra.mxu0 0.0
  %643 = vmatpush.msra.mxu0 0.0
  %644 = vmatpush.msra.mxu0 %v132
  %645 = vmatpush.msra.mxu0 %v131
  %646 = vmatpush.msra.mxu0 %v130
  %647 = vmatpush.msra.mxu0 %v129
  %648 = vmatmul.f32.gmra.mxu0 %v544
  %v649 = vpop.f32.mrf.mxu0
  %v650 = vadd.f32 0.0, %v649
  %651 = vdwg.mxu0
  %v652 = vadd.f32 %v631, %v650
  %v653 = vxor.u32 %v652, 2147483648
  %v654 = vmul.f32 %v653, 1.442695
  %v655 = vpow.pop %v654
  %v656 = vadd.f32 %v655, 1.0
  %v657 = vrcp.pop %v656
  %v658 = vmul.f32 %v656, %v657
  %v659 = vsub.f32 1.0, %v658
  %v660 = vmul.f32 %v657, %v659
  %v661 = vadd.f32 %v657, %v660
  %vm662 = vweird.f32 %v656
  %vm663 = vweird.f32 %v657
  %vm664 = vmor %vm662, %vm663
  %v665 = vsel %vm664, %v657, %v661
  %v666 = vand.u32 2147483647, %v656
  %vm667 = vcmp.eq.f32.partialorder %v666, 8.507059e+37
  %v668 = vand.u32 %v656, 2147483648
  %v669 = vor.u32 1.1754944e-38, %v668
  %v670 = vsel %vm667, %v669, %v665
  %v671 = vmul.f32 1.0, %v670
  %v672 = vtanh.pop %v652
  %v673 = vmul.f32 %v671, %v534
  %675 = vrot.lane.b32.xlu0 %v672, 64
  %v676 = vpop.permute.xlu0 %675
  %v678 = vmul.f32 %v671, %v676
  %680 = vrot.lane.b32.xlu0 %v678, 32
  %v681 = vpop.permute.xlu0 %680
  %v683 = vadd.f32 %v673, %v681
  %v684 = vtanh.pop %v683
  %686 = vrot.lane.b32.xlu0 %v684, 64
  %v687 = vpop.permute.xlu0 %686
  %v689 = vmul.f32 %v671, %v687
  %691 = vrot.lane.b32.xlu0 %v689, 32
  %v692 = vpop.permute.xlu0 %691
  %v693 = vsel %vm146, %v692, 0
  %695 = vmatpush.msra.mxu0 0.0
  %696 = vmatpush.msra.mxu0 0.0
  %697 = vmatpush.msra.mxu0 0.0
  %698 = vmatpush.msra.mxu0 0.0
  %699 = vmatpush.msra.mxu0 0.0
  %700 = vmatpush.msra.mxu0 0.0
  %701 = vmatpush.msra.mxu0 0.0
  %702 = vmatpush.msra.mxu0 0.0
  %703 = vmatpush.msra.mxu0 0.0
  %704 = vmatpush.msra.mxu0 0.0
  %705 = vmatpush.msra.mxu0 0.0
  %706 = vmatpush.msra.mxu0 0.0
  %707 = vmatpush.msra.mxu0 %v136
  %708 = vmatpush.msra.mxu0 %v135
  %709 = vmatpush.msra.mxu0 %v134
  %710 = vmatpush.msra.mxu0 %v133
  %711 = vmatmul.f32.gmra.mxu0 %v693
  %v712 = vpop.f32.mrf.mxu0
  %v713 = vadd.f32 %v629, %v712
  %714 = vdwg.mxu0
  %v715 = vadd.f32 %v713, %v262
  %v716 = vxor.u32 %v715, 2147483648
  %v717 = vmul.f32 %v716, 1.442695
  %v718 = vpow.pop %v717
  %v719 = vadd.f32 %v718, 1.0
  %v720 = vrcp.pop %v719
  %v721 = vmul.f32 %v719, %v720
  %v722 = vsub.f32 1.0, %v721
  %v723 = vmul.f32 %v720, %v722
  %v724 = vadd.f32 %v720, %v723
  %vm725 = vweird.f32 %v719
  %vm726 = vweird.f32 %v720
  %vm727 = vmor %vm725, %vm726
  %v728 = vsel %vm727, %v720, %v724
  %v729 = vand.u32 2147483647, %v719
  %vm730 = vcmp.eq.f32.partialorder %v729, 8.507059e+37
  %v731 = vand.u32 %v719, 2147483648
  %v732 = vor.u32 1.1754944e-38, %v731
  %v733 = vsel %vm730, %v732, %v728
  %v734 = vmul.f32 1.0, %v733
  %v735 = vtanh.pop %v715
  %v736 = vmul.f32 %v734, %v597
  %738 = vrot.lane.b32.xlu0 %v735, 64
  %v739 = vpop.permute.xlu0 %738
  %v741 = vmul.f32 %v734, %v739
  %743 = vrot.lane.b32.xlu0 %v741, 32
  %v744 = vpop.permute.xlu0 %743
  %v746 = vadd.f32 %v736, %v744
  %v747 = vtanh.pop %v746
  %749 = vrot.lane.b32.xlu0 %v747, 64
  %v750 = vpop.permute.xlu0 %749
  %v752 = vmul.f32 %v734, %v750
  %754 = vrot.lane.b32.xlu0 %v752, 32
  %v755 = vpop.permute.xlu0 %754
  %757 = vst.msk [vmem:[#allocation7 + $0x18] sm:$0xff] %vm146, %v755
  %v758 = vsel %vm146, %v755, 0
  %760 = vmatpush.msra.mxu0 0.0
  %761 = vmatpush.msra.mxu0 0.0
  %762 = vmatpush.msra.mxu0 0.0
  %763 = vmatpush.msra.mxu0 0.0
  %764 = vmatpush.msra.mxu0 0.0
  %765 = vmatpush.msra.mxu0 0.0
  %766 = vmatpush.msra.mxu0 0.0
  %767 = vmatpush.msra.mxu0 0.0
  %768 = vmatpush.msra.mxu0 0.0
  %769 = vmatpush.msra.mxu0 0.0
  %770 = vmatpush.msra.mxu0 0.0
  %771 = vmatpush.msra.mxu0 0.0
  %772 = vmatpush.msra.mxu0 %v140
  %773 = vmatpush.msra.mxu0 %v139
  %774 = vmatpush.msra.mxu0 %v138
  %775 = vmatpush.msra.mxu0 %v137
  %776 = vmatmul.f32.gmra.mxu0 %v758
  %v777 = vpop.f32.mrf.mxu0
  %v778 = vadd.f32 0.0, %v777
  %779 = vdwg.mxu0
  %v780 = vld [vmem:[#allocation6 + $0x20] sm:$0xff]
  %781 = vmatpush.msra.mxu0 0.0
  %782 = vmatpush.msra.mxu0 0.0
  %783 = vmatpush.msra.mxu0 0.0
  %784 = vmatpush.msra.mxu0 0.0
  %785 = vmatpush.msra.mxu0 0.0
  %786 = vmatpush.msra.mxu0 0.0
  %787 = vmatpush.msra.mxu0 0.0
  %788 = vmatpush.msra.mxu0 0.0
  %789 = vmatpush.msra.mxu0 0.0
  %790 = vmatpush.msra.mxu0 0.0
  %791 = vmatpush.msra.mxu0 0.0
  %792 = vmatpush.msra.mxu0 0.0
  %793 = vmatpush.msra.mxu0 %v132
  %794 = vmatpush.msra.mxu0 %v131
  %795 = vmatpush.msra.mxu0 %v130
  %796 = vmatpush.msra.mxu0 %v129
  %797 = vmatmul.f32.gmra.mxu0 %v693
  %v798 = vpop.f32.mrf.mxu0
  %v799 = vadd.f32 0.0, %v798
  %800 = vdwg.mxu0
  %v801 = vadd.f32 %v780, %v799
  %v802 = vxor.u32 %v801, 2147483648
  %v803 = vmul.f32 %v802, 1.442695
  %v804 = vpow.pop %v803
  %v805 = vadd.f32 %v804, 1.0
  %v806 = vrcp.pop %v805
  %v807 = vmul.f32 %v805, %v806
  %v808 = vsub.f32 1.0, %v807
  %v809 = vmul.f32 %v806, %v808
  %v810 = vadd.f32 %v806, %v809
  %vm811 = vweird.f32 %v805
  %vm812 = vweird.f32 %v806
  %vm813 = vmor %vm811, %vm812
  %v814 = vsel %vm813, %v806, %v810
  %v815 = vand.u32 2147483647, %v805
  %vm816 = vcmp.eq.f32.partialorder %v815, 8.507059e+37
  %v817 = vand.u32 %v805, 2147483648
  %v818 = vor.u32 1.1754944e-38, %v817
  %v819 = vsel %vm816, %v818, %v814
  %v820 = vmul.f32 1.0, %v819
  %v821 = vtanh.pop %v801
  %v822 = vmul.f32 %v820, %v683
  %824 = vrot.lane.b32.xlu0 %v821, 64
  %v825 = vpop.permute.xlu0 %824
  %v827 = vmul.f32 %v820, %v825
  %829 = vrot.lane.b32.xlu0 %v827, 32
  %v830 = vpop.permute.xlu0 %829
  %v832 = vadd.f32 %v822, %v830
  %v833 = vtanh.pop %v832
  %835 = vrot.lane.b32.xlu0 %v833, 64
  %v836 = vpop.permute.xlu0 %835
  %v838 = vmul.f32 %v820, %v836
  %840 = vrot.lane.b32.xlu0 %v838, 32
  %v841 = vpop.permute.xlu0 %840
  %v842 = vsel %vm146, %v841, 0
  %844 = vmatpush.msra.mxu0 0.0
  %845 = vmatpush.msra.mxu0 0.0
  %846 = vmatpush.msra.mxu0 0.0
  %847 = vmatpush.msra.mxu0 0.0
  %848 = vmatpush.msra.mxu0 0.0
  %849 = vmatpush.msra.mxu0 0.0
  %850 = vmatpush.msra.mxu0 0.0
  %851 = vmatpush.msra.mxu0 0.0
  %852 = vmatpush.msra.mxu0 0.0
  %853 = vmatpush.msra.mxu0 0.0
  %854 = vmatpush.msra.mxu0 0.0
  %855 = vmatpush.msra.mxu0 0.0
  %856 = vmatpush.msra.mxu0 %v136
  %857 = vmatpush.msra.mxu0 %v135
  %858 = vmatpush.msra.mxu0 %v134
  %859 = vmatpush.msra.mxu0 %v133
  %860 = vmatmul.f32.gmra.mxu0 %v842
  %v861 = vpop.f32.mrf.mxu0
  %v862 = vadd.f32 %v778, %v861
  %863 = vdwg.mxu0
  %v864 = vadd.f32 %v862, %v262
  %v865 = vxor.u32 %v864, 2147483648
  %v866 = vmul.f32 %v865, 1.442695
  %v867 = vpow.pop %v866
  %v868 = vadd.f32 %v867, 1.0
  %v869 = vrcp.pop %v868
  %v870 = vmul.f32 %v868, %v869
  %v871 = vsub.f32 1.0, %v870
  %v872 = vmul.f32 %v869, %v871
  %v873 = vadd.f32 %v869, %v872
  %vm874 = vweird.f32 %v868
  %vm875 = vweird.f32 %v869
  %vm876 = vmor %vm874, %vm875
  %v877 = vsel %vm876, %v869, %v873
  %v878 = vand.u32 2147483647, %v868
  %vm879 = vcmp.eq.f32.partialorder %v878, 8.507059e+37
  %v880 = vand.u32 %v868, 2147483648
  %v881 = vor.u32 1.1754944e-38, %v880
  %v882 = vsel %vm879, %v881, %v877
  %v883 = vmul.f32 1.0, %v882
  %v884 = vtanh.pop %v864
  %v885 = vmul.f32 %v883, %v746
  %887 = vrot.lane.b32.xlu0 %v884, 64
  %v888 = vpop.permute.xlu0 %887
  %v890 = vmul.f32 %v883, %v888
  %892 = vrot.lane.b32.xlu0 %v890, 32
  %v893 = vpop.permute.xlu0 %892
  %v895 = vadd.f32 %v885, %v893
  %v896 = vtanh.pop %v895
  %898 = vrot.lane.b32.xlu0 %v896, 64
  %v899 = vpop.permute.xlu0 %898
  %v901 = vmul.f32 %v883, %v899
  %903 = vrot.lane.b32.xlu0 %v901, 32
  %v904 = vpop.permute.xlu0 %903
  %906 = vst.msk [vmem:[#allocation7 + $0x20] sm:$0xff] %vm146, %v904
  %v907 = vsel %vm146, %v904, 0
  %909 = vmatpush.msra.mxu0 0.0
  %910 = vmatpush.msra.mxu0 0.0
  %911 = vmatpush.msra.mxu0 0.0
  %912 = vmatpush.msra.mxu0 0.0
  %913 = vmatpush.msra.mxu0 0.0
  %914 = vmatpush.msra.mxu0 0.0
  %915 = vmatpush.msra.mxu0 0.0
  %916 = vmatpush.msra.mxu0 0.0
  %917 = vmatpush.msra.mxu0 0.0
  %918 = vmatpush.msra.mxu0 0.0
  %919 = vmatpush.msra.mxu0 0.0
  %920 = vmatpush.msra.mxu0 0.0
  %921 = vmatpush.msra.mxu0 %v140
  %922 = vmatpush.msra.mxu0 %v139
  %923 = vmatpush.msra.mxu0 %v138
  %924 = vmatpush.msra.mxu0 %v137
  %925 = vmatmul.f32.gmra.mxu0 %v907
  %v926 = vpop.f32.mrf.mxu0
  %v927 = vadd.f32 0.0, %v926
  %928 = vdwg.mxu0
  %v929 = vld [vmem:[#allocation6 + $0x28] sm:$0xff]
  %930 = vmatpush.msra.mxu0 0.0
  %931 = vmatpush.msra.mxu0 0.0
  %932 = vmatpush.msra.mxu0 0.0
  %933 = vmatpush.msra.mxu0 0.0
  %934 = vmatpush.msra.mxu0 0.0
  %935 = vmatpush.msra.mxu0 0.0
  %936 = vmatpush.msra.mxu0 0.0
  %937 = vmatpush.msra.mxu0 0.0
  %938 = vmatpush.msra.mxu0 0.0
  %939 = vmatpush.msra.mxu0 0.0
  %940 = vmatpush.msra.mxu0 0.0
  %941 = vmatpush.msra.mxu0 0.0
  %942 = vmatpush.msra.mxu0 %v132
  %943 = vmatpush.msra.mxu0 %v131
  %944 = vmatpush.msra.mxu0 %v130
  %945 = vmatpush.msra.mxu0 %v129
  %946 = vmatmul.f32.gmra.mxu0 %v842
  %v947 = vpop.f32.mrf.mxu0
  %v948 = vadd.f32 0.0, %v947
  %949 = vdwg.mxu0
  %v950 = vadd.f32 %v929, %v948
  %v951 = vxor.u32 %v950, 2147483648
  %v952 = vmul.f32 %v951, 1.442695
  %v953 = vpow.pop %v952
  %v954 = vadd.f32 %v953, 1.0
  %v955 = vrcp.pop %v954
  %v956 = vmul.f32 %v954, %v955
  %v957 = vsub.f32 1.0, %v956
  %v958 = vmul.f32 %v955, %v957
  %v959 = vadd.f32 %v955, %v958
  %vm960 = vweird.f32 %v954
  %vm961 = vweird.f32 %v955
  %vm962 = vmor %vm960, %vm961
  %v963 = vsel %vm962, %v955, %v959
  %v964 = vand.u32 2147483647, %v954
  %vm965 = vcmp.eq.f32.partialorder %v964, 8.507059e+37
  %v966 = vand.u32 %v954, 2147483648
  %v967 = vor.u32 1.1754944e-38, %v966
  %v968 = vsel %vm965, %v967, %v963
  %v969 = vmul.f32 1.0, %v968
  %v970 = vtanh.pop %v950
  %v971 = vmul.f32 %v969, %v832
  %973 = vrot.lane.b32.xlu0 %v970, 64
  %v974 = vpop.permute.xlu0 %973
  %v976 = vmul.f32 %v969, %v974
  %978 = vrot.lane.b32.xlu0 %v976, 32
  %v979 = vpop.permute.xlu0 %978
  %v981 = vadd.f32 %v971, %v979
  %v982 = vtanh.pop %v981
  %984 = vrot.lane.b32.xlu0 %v982, 64
  %v985 = vpop.permute.xlu0 %984
  %v987 = vmul.f32 %v969, %v985
  %989 = vrot.lane.b32.xlu0 %v987, 32
  %v990 = vpop.permute.xlu0 %989
  %v991 = vsel %vm146, %v990, 0
  %993 = vmatpush.msra.mxu0 0.0
  %994 = vmatpush.msra.mxu0 0.0
  %995 = vmatpush.msra.mxu0 0.0
  %996 = vmatpush.msra.mxu0 0.0
  %997 = vmatpush.msra.mxu0 0.0
  %998 = vmatpush.msra.mxu0 0.0
  %999 = vmatpush.msra.mxu0 0.0
  %1000 = vmatpush.msra.mxu0 0.0
  %1001 = vmatpush.msra.mxu0 0.0
  %1002 = vmatpush.msra.mxu0 0.0
  %1003 = vmatpush.msra.mxu0 0.0
  %1004 = vmatpush.msra.mxu0 0.0
  %1005 = vmatpush.msra.mxu0 %v136
  %1006 = vmatpush.msra.mxu0 %v135
  %1007 = vmatpush.msra.mxu0 %v134
  %1008 = vmatpush.msra.mxu0 %v133
  %1009 = vmatmul.f32.gmra.mxu0 %v991
  %v1010 = vpop.f32.mrf.mxu0
  %v1011 = vadd.f32 %v927, %v1010
  %1012 = vdwg.mxu0
  %v1013 = vadd.f32 %v1011, %v262
  %v1014 = vxor.u32 %v1013, 2147483648
  %v1015 = vmul.f32 %v1014, 1.442695
  %v1016 = vpow.pop %v1015
  %v1017 = vadd.f32 %v1016, 1.0
  %v1018 = vrcp.pop %v1017
  %v1019 = vmul.f32 %v1017, %v1018
  %v1020 = vsub.f32 1.0, %v1019
  %v1021 = vmul.f32 %v1018, %v1020
  %v1022 = vadd.f32 %v1018, %v1021
  %vm1023 = vweird.f32 %v1017
  %vm1024 = vweird.f32 %v1018
  %vm1025 = vmor %vm1023, %vm1024
  %v1026 = vsel %vm1025, %v1018, %v1022
  %v1027 = vand.u32 2147483647, %v1017
  %vm1028 = vcmp.eq.f32.partialorder %v1027, 8.507059e+37
  %v1029 = vand.u32 %v1017, 2147483648
  %v1030 = vor.u32 1.1754944e-38, %v1029
  %v1031 = vsel %vm1028, %v1030, %v1026
  %v1032 = vmul.f32 1.0, %v1031
  %v1033 = vtanh.pop %v1013
  %v1034 = vmul.f32 %v1032, %v895
  %1036 = vrot.lane.b32.xlu0 %v1033, 64
  %v1037 = vpop.permute.xlu0 %1036
  %v1039 = vmul.f32 %v1032, %v1037
  %1041 = vrot.lane.b32.xlu0 %v1039, 32
  %v1042 = vpop.permute.xlu0 %1041
  %v1044 = vadd.f32 %v1034, %v1042
  %v1045 = vtanh.pop %v1044
  %1047 = vrot.lane.b32.xlu0 %v1045, 64
  %v1048 = vpop.permute.xlu0 %1047
  %v1050 = vmul.f32 %v1032, %v1048
  %1052 = vrot.lane.b32.xlu0 %v1050, 32
  %v1053 = vpop.permute.xlu0 %1052
  %1055 = vst.msk [vmem:[#allocation7 + $0x28] sm:$0xff] %vm146, %v1053
  %v1056 = vsel %vm146, %v1053, 0
  %1058 = vmatpush.msra.mxu0 0.0
  %1059 = vmatpush.msra.mxu0 0.0
  %1060 = vmatpush.msra.mxu0 0.0
  %1061 = vmatpush.msra.mxu0 0.0
  %1062 = vmatpush.msra.mxu0 0.0
  %1063 = vmatpush.msra.mxu0 0.0
  %1064 = vmatpush.msra.mxu0 0.0
  %1065 = vmatpush.msra.mxu0 0.0
  %1066 = vmatpush.msra.mxu0 0.0
  %1067 = vmatpush.msra.mxu0 0.0
  %1068 = vmatpush.msra.mxu0 0.0
  %1069 = vmatpush.msra.mxu0 0.0
  %1070 = vmatpush.msra.mxu0 %v140
  %1071 = vmatpush.msra.mxu0 %v139
  %1072 = vmatpush.msra.mxu0 %v138
  %1073 = vmatpush.msra.mxu0 %v137
  %1074 = vmatmul.f32.gmra.mxu0 %v1056
  %v1075 = vpop.f32.mrf.mxu0
  %v1076 = vadd.f32 0.0, %v1075
  %1077 = vdwg.mxu0
  %v1078 = vld [vmem:[#allocation6 + $0x30] sm:$0xff]
  %1079 = vmatpush.msra.mxu0 0.0
  %1080 = vmatpush.msra.mxu0 0.0
  %1081 = vmatpush.msra.mxu0 0.0
  %1082 = vmatpush.msra.mxu0 0.0
  %1083 = vmatpush.msra.mxu0 0.0
  %1084 = vmatpush.msra.mxu0 0.0
  %1085 = vmatpush.msra.mxu0 0.0
  %1086 = vmatpush.msra.mxu0 0.0
  %1087 = vmatpush.msra.mxu0 0.0
  %1088 = vmatpush.msra.mxu0 0.0
  %1089 = vmatpush.msra.mxu0 0.0
  %1090 = vmatpush.msra.mxu0 0.0
  %1091 = vmatpush.msra.mxu0 %v132
  %1092 = vmatpush.msra.mxu0 %v131
  %1093 = vmatpush.msra.mxu0 %v130
  %1094 = vmatpush.msra.mxu0 %v129
  %1095 = vmatmul.f32.gmra.mxu0 %v991
  %v1096 = vpop.f32.mrf.mxu0
  %v1097 = vadd.f32 0.0, %v1096
  %1098 = vdwg.mxu0
  %v1099 = vadd.f32 %v1078, %v1097
  %v1100 = vxor.u32 %v1099, 2147483648
  %v1101 = vmul.f32 %v1100, 1.442695
  %v1102 = vpow.pop %v1101
  %v1103 = vadd.f32 %v1102, 1.0
  %v1104 = vrcp.pop %v1103
  %v1105 = vmul.f32 %v1103, %v1104
  %v1106 = vsub.f32 1.0, %v1105
  %v1107 = vmul.f32 %v1104, %v1106
  %v1108 = vadd.f32 %v1104, %v1107
  %vm1109 = vweird.f32 %v1103
  %vm1110 = vweird.f32 %v1104
  %vm1111 = vmor %vm1109, %vm1110
  %v1112 = vsel %vm1111, %v1104, %v1108
  %v1113 = vand.u32 2147483647, %v1103
  %vm1114 = vcmp.eq.f32.partialorder %v1113, 8.507059e+37
  %v1115 = vand.u32 %v1103, 2147483648
  %v1116 = vor.u32 1.1754944e-38, %v1115
  %v1117 = vsel %vm1114, %v1116, %v1112
  %v1118 = vmul.f32 1.0, %v1117
  %v1119 = vtanh.pop %v1099
  %v1120 = vmul.f32 %v1118, %v981
  %1122 = vrot.lane.b32.xlu0 %v1119, 64
  %v1123 = vpop.permute.xlu0 %1122
  %v1125 = vmul.f32 %v1118, %v1123
  %1127 = vrot.lane.b32.xlu0 %v1125, 32
  %v1128 = vpop.permute.xlu0 %1127
  %v1130 = vadd.f32 %v1120, %v1128
  %v1131 = vtanh.pop %v1130
  %1133 = vrot.lane.b32.xlu0 %v1131, 64
  %v1134 = vpop.permute.xlu0 %1133
  %v1136 = vmul.f32 %v1118, %v1134
  %1138 = vrot.lane.b32.xlu0 %v1136, 32
  %v1139 = vpop.permute.xlu0 %1138
  %v1140 = vsel %vm146, %v1139, 0
  %1142 = vmatpush.msra.mxu0 0.0
  %1143 = vmatpush.msra.mxu0 0.0
  %1144 = vmatpush.msra.mxu0 0.0
  %1145 = vmatpush.msra.mxu0 0.0
  %1146 = vmatpush.msra.mxu0 0.0
  %1147 = vmatpush.msra.mxu0 0.0
  %1148 = vmatpush.msra.mxu0 0.0
  %1149 = vmatpush.msra.mxu0 0.0
  %1150 = vmatpush.msra.mxu0 0.0
  %1151 = vmatpush.msra.mxu0 0.0
  %1152 = vmatpush.msra.mxu0 0.0
  %1153 = vmatpush.msra.mxu0 0.0
  %1154 = vmatpush.msra.mxu0 %v136
  %1155 = vmatpush.msra.mxu0 %v135
  %1156 = vmatpush.msra.mxu0 %v134
  %1157 = vmatpush.msra.mxu0 %v133
  %1158 = vmatmul.f32.gmra.mxu0 %v1140
  %v1159 = vpop.f32.mrf.mxu0
  %v1160 = vadd.f32 %v1076, %v1159
  %1161 = vdwg.mxu0
  %v1162 = vadd.f32 %v1160, %v262
  %v1163 = vxor.u32 %v1162, 2147483648
  %v1164 = vmul.f32 %v1163, 1.442695
  %v1165 = vpow.pop %v1164
  %v1166 = vadd.f32 %v1165, 1.0
  %v1167 = vrcp.pop %v1166
  %v1168 = vmul.f32 %v1166, %v1167
  %v1169 = vsub.f32 1.0, %v1168
  %v1170 = vmul.f32 %v1167, %v1169
  %v1171 = vadd.f32 %v1167, %v1170
  %vm1172 = vweird.f32 %v1166
  %vm1173 = vweird.f32 %v1167
  %vm1174 = vmor %vm1172, %vm1173
  %v1175 = vsel %vm1174, %v1167, %v1171
  %v1176 = vand.u32 2147483647, %v1166
  %vm1177 = vcmp.eq.f32.partialorder %v1176, 8.507059e+37
  %v1178 = vand.u32 %v1166, 2147483648
  %v1179 = vor.u32 1.1754944e-38, %v1178
  %v1180 = vsel %vm1177, %v1179, %v1175
  %v1181 = vmul.f32 1.0, %v1180
  %v1182 = vtanh.pop %v1162
  %v1183 = vmul.f32 %v1181, %v1044
  %1185 = vrot.lane.b32.xlu0 %v1182, 64
  %v1186 = vpop.permute.xlu0 %1185
  %v1188 = vmul.f32 %v1181, %v1186
  %1190 = vrot.lane.b32.xlu0 %v1188, 32
  %v1191 = vpop.permute.xlu0 %1190
  %v1193 = vadd.f32 %v1183, %v1191
  %v1194 = vtanh.pop %v1193
  %1196 = vrot.lane.b32.xlu0 %v1194, 64
  %v1197 = vpop.permute.xlu0 %1196
  %v1199 = vmul.f32 %v1181, %v1197
  %1201 = vrot.lane.b32.xlu0 %v1199, 32
  %v1202 = vpop.permute.xlu0 %1201
  %1204 = vst.msk [vmem:[#allocation7 + $0x30] sm:$0xff] %vm146, %v1202
  %v1205 = vsel %vm146, %v1202, 0
  %1207 = vmatpush.msra.mxu0 0.0
  %1208 = vmatpush.msra.mxu0 0.0
  %1209 = vmatpush.msra.mxu0 0.0
  %1210 = vmatpush.msra.mxu0 0.0
  %1211 = vmatpush.msra.mxu0 0.0
  %1212 = vmatpush.msra.mxu0 0.0
  %1213 = vmatpush.msra.mxu0 0.0
  %1214 = vmatpush.msra.mxu0 0.0
  %1215 = vmatpush.msra.mxu0 0.0
  %1216 = vmatpush.msra.mxu0 0.0
  %1217 = vmatpush.msra.mxu0 0.0
  %1218 = vmatpush.msra.mxu0 0.0
  %1219 = vmatpush.msra.mxu0 %v140
  %1220 = vmatpush.msra.mxu0 %v139
  %1221 = vmatpush.msra.mxu0 %v138
  %1222 = vmatpush.msra.mxu0 %v137
  %1223 = vmatmul.f32.gmra.mxu0 %v1205
  %v1224 = vpop.f32.mrf.mxu0
  %v1225 = vadd.f32 0.0, %v1224
  %1226 = vdwg.mxu0
  %v1227 = vld [vmem:[#allocation6 + $0x38] sm:$0xff]
  %1228 = vmatpush.msra.mxu0 0.0
  %1229 = vmatpush.msra.mxu0 0.0
  %1230 = vmatpush.msra.mxu0 0.0
  %1231 = vmatpush.msra.mxu0 0.0
  %1232 = vmatpush.msra.mxu0 0.0
  %1233 = vmatpush.msra.mxu0 0.0
  %1234 = vmatpush.msra.mxu0 0.0
  %1235 = vmatpush.msra.mxu0 0.0
  %1236 = vmatpush.msra.mxu0 0.0
  %1237 = vmatpush.msra.mxu0 0.0
  %1238 = vmatpush.msra.mxu0 0.0
  %1239 = vmatpush.msra.mxu0 0.0
  %1240 = vmatpush.msra.mxu0 %v132
  %1241 = vmatpush.msra.mxu0 %v131
  %1242 = vmatpush.msra.mxu0 %v130
  %1243 = vmatpush.msra.mxu0 %v129
  %1244 = vmatmul.f32.gmra.mxu0 %v1140
  %v1245 = vpop.f32.mrf.mxu0
  %v1246 = vadd.f32 0.0, %v1245
  %1247 = vdwg.mxu0
  %v1248 = vadd.f32 %v1227, %v1246
  %v1249 = vxor.u32 %v1248, 2147483648
  %v1250 = vmul.f32 %v1249, 1.442695
  %v1251 = vpow.pop %v1250
  %v1252 = vadd.f32 %v1251, 1.0
  %v1253 = vrcp.pop %v1252
  %v1254 = vmul.f32 %v1252, %v1253
  %v1255 = vsub.f32 1.0, %v1254
  %v1256 = vmul.f32 %v1253, %v1255
  %v1257 = vadd.f32 %v1253, %v1256
  %vm1258 = vweird.f32 %v1252
  %vm1259 = vweird.f32 %v1253
  %vm1260 = vmor %vm1258, %vm1259
  %v1261 = vsel %vm1260, %v1253, %v1257
  %v1262 = vand.u32 2147483647, %v1252
  %vm1263 = vcmp.eq.f32.partialorder %v1262, 8.507059e+37
  %v1264 = vand.u32 %v1252, 2147483648
  %v1265 = vor.u32 1.1754944e-38, %v1264
  %v1266 = vsel %vm1263, %v1265, %v1261
  %v1267 = vmul.f32 1.0, %v1266
  %v1268 = vtanh.pop %v1248
  %v1269 = vmul.f32 %v1267, %v1130
  %1271 = vrot.lane.b32.xlu0 %v1268, 64
  %v1272 = vpop.permute.xlu0 %1271
  %v1274 = vmul.f32 %v1267, %v1272
  %1276 = vrot.lane.b32.xlu0 %v1274, 32
  %v1277 = vpop.permute.xlu0 %1276
  %v1279 = vadd.f32 %v1269, %v1277
  %v1280 = vtanh.pop %v1279
  %1282 = vrot.lane.b32.xlu0 %v1280, 64
  %v1283 = vpop.permute.xlu0 %1282
  %v1285 = vmul.f32 %v1267, %v1283
  %1287 = vrot.lane.b32.xlu0 %v1285, 32
  %v1288 = vpop.permute.xlu0 %1287
  %v1289 = vsel %vm146, %v1288, 0
  %1291 = vmatpush.msra.mxu0 0.0
  %1292 = vmatpush.msra.mxu0 0.0
  %1293 = vmatpush.msra.mxu0 0.0
  %1294 = vmatpush.msra.mxu0 0.0
  %1295 = vmatpush.msra.mxu0 0.0
  %1296 = vmatpush.msra.mxu0 0.0
  %1297 = vmatpush.msra.mxu0 0.0
  %1298 = vmatpush.msra.mxu0 0.0
  %1299 = vmatpush.msra.mxu0 0.0
  %1300 = vmatpush.msra.mxu0 0.0
  %1301 = vmatpush.msra.mxu0 0.0
  %1302 = vmatpush.msra.mxu0 0.0
  %1303 = vmatpush.msra.mxu0 %v136
  %1304 = vmatpush.msra.mxu0 %v135
  %1305 = vmatpush.msra.mxu0 %v134
  %1306 = vmatpush.msra.mxu0 %v133
  %1307 = vmatmul.f32.gmra.mxu0 %v1289
  %v1308 = vpop.f32.mrf.mxu0
  %v1309 = vadd.f32 %v1225, %v1308
  %1310 = vdwg.mxu0
  %v1311 = vadd.f32 %v1309, %v262
  %v1312 = vxor.u32 %v1311, 2147483648
  %v1313 = vmul.f32 %v1312, 1.442695
  %v1314 = vpow.pop %v1313
  %v1315 = vadd.f32 %v1314, 1.0
  %v1316 = vrcp.pop %v1315
  %v1317 = vmul.f32 %v1315, %v1316
  %v1318 = vsub.f32 1.0, %v1317
  %v1319 = vmul.f32 %v1316, %v1318
  %v1320 = vadd.f32 %v1316, %v1319
  %vm1321 = vweird.f32 %v1315
  %vm1322 = vweird.f32 %v1316
  %vm1323 = vmor %vm1321, %vm1322
  %v1324 = vsel %vm1323, %v1316, %v1320
  %v1325 = vand.u32 2147483647, %v1315
  %vm1326 = vcmp.eq.f32.partialorder %v1325, 8.507059e+37
  %v1327 = vand.u32 %v1315, 2147483648
  %v1328 = vor.u32 1.1754944e-38, %v1327
  %v1329 = vsel %vm1326, %v1328, %v1324
  %v1330 = vmul.f32 1.0, %v1329
  %v1331 = vtanh.pop %v1311
  %v1332 = vmul.f32 %v1330, %v1193
  %1334 = vrot.lane.b32.xlu0 %v1331, 64
  %v1335 = vpop.permute.xlu0 %1334
  %v1337 = vmul.f32 %v1330, %v1335
  %1339 = vrot.lane.b32.xlu0 %v1337, 32
  %v1340 = vpop.permute.xlu0 %1339
  %v1342 = vadd.f32 %v1332, %v1340
  %v1343 = vtanh.pop %v1342
  %1345 = vrot.lane.b32.xlu0 %v1343, 64
  %v1346 = vpop.permute.xlu0 %1345
  %v1348 = vmul.f32 %v1330, %v1346
  %1350 = vrot.lane.b32.xlu0 %v1348, 32
  %v1351 = vpop.permute.xlu0 %1350
  %1353 = vst.msk [vmem:[#allocation7 + $0x38] sm:$0xff] %vm146, %v1351
  %1355 = vst.msk [vmem:[#allocation2] sm:$0xff] %vm146, %v1288
  %1357 = vrot.lane.b32.xlu0 %v1279, 96
  %v1358 = vpop.permute.xlu0 %1357
  %1360 = vst.msk [vmem:[#allocation3] sm:$0xff] %vm146, %v1358
  %1361 = vst.msk [vmem:[#allocation4] sm:$0xff] %vm146, %v1351
  %1363 = vrot.lane.b32.xlu0 %v1342, 96
  %v1364 = vpop.permute.xlu0 %1363
  %1366 = vst.msk [vmem:[#allocation5] sm:$0xff] %vm146, %v1364
  %v1367 = vld [vmem:[#allocation7] sm:$0xff]
  %v1368 = vld [vmem:[#allocation7 + $0x8] sm:$0xff]
  %v1369 = vld [vmem:[#allocation7 + $0x10] sm:$0xff]
  %v1370 = vld [vmem:[#allocation7 + $0x18] sm:$0xff]
  %v1371 = vld [vmem:[#allocation7 + $0x20] sm:$0xff]
  %v1372 = vld [vmem:[#allocation7 + $0x28] sm:$0xff]
  %v1373 = vld [vmem:[#allocation7 + $0x30] sm:$0xff]
  %v1374 = vld [vmem:[#allocation7 + $0x38] sm:$0xff]
  %v1375 = vld [vmem:[%s7] sm:$0xff]
  %v1376 = vld [vmem:[%s7 + $0x8] sm:$0xff]
  %v1377 = vld [vmem:[%s7 + $0x10] sm:$0xff]
  %v1378 = vld [vmem:[%s7 + $0x18] sm:$0xff]
  %v1379 = vld [vmem:[%s8] sm:$0x1]
  %v1381 = vperm.slane %v1379, 0
  %v1384 = vsel %vm146, %v1367, 0
  %v1387 = vsel %vm146, %v1368, 0
  %v1390 = vsel %vm146, %v1369, 0
  %v1393 = vsel %vm146, %v1370, 0
  %v1396 = vsel %vm146, %v1371, 0
  %v1399 = vsel %vm146, %v1372, 0
  %v1402 = vsel %vm146, %v1373, 0
  %v1405 = vsel %vm146, %v1374, 0
  %1407 = vmatpush.msra.mxu0 0.0
  %1408 = vmatpush.msra.mxu0 0.0
  %1409 = vmatpush.msra.mxu0 0.0
  %1410 = vmatpush.msra.mxu0 0.0
  %1411 = vmatpush.msra.mxu0 0.0
  %1412 = vmatpush.msra.mxu0 0.0
  %1413 = vmatpush.msra.mxu0 0.0
  %1414 = vmatpush.msra.mxu0 0.0
  %1415 = vmatpush.msra.mxu0 0.0
  %1416 = vmatpush.msra.mxu0 0.0
  %1417 = vmatpush.msra.mxu0 0.0
  %1418 = vmatpush.msra.mxu0 0.0
  %1419 = vmatpush.msra.mxu0 %v1378
  %1420 = vmatpush.msra.mxu0 %v1377
  %1421 = vmatpush.msra.mxu0 %v1376
  %1422 = vmatpush.msra.mxu0 %v1375
  %1423 = vmatmul.f32.gmra.mxu0 %v1384
  %v1424 = vpop.f32.mrf.mxu0
  %v1425 = vadd.f32 %v1381, %v1424
  %1426 = vmatmul.f32.gmra.mxu0 %v1387
  %v1427 = vpop.f32.mrf.mxu0
  %v1428 = vadd.f32 %v1381, %v1427
  %1429 = vmatmul.f32.gmra.mxu0 %v1390
  %v1430 = vpop.f32.mrf.mxu0
  %v1431 = vadd.f32 %v1381, %v1430
  %1432 = vmatmul.f32.gmra.mxu0 %v1393
  %v1433 = vpop.f32.mrf.mxu0
  %v1434 = vadd.f32 %v1381, %v1433
  %1435 = vmatmul.f32.gmra.mxu0 %v1396
  %v1436 = vpop.f32.mrf.mxu0
  %v1437 = vadd.f32 %v1381, %v1436
  %1438 = vmatmul.f32.gmra.mxu0 %v1399
  %v1439 = vpop.f32.mrf.mxu0
  %v1440 = vadd.f32 %v1381, %v1439
  %1441 = vmatmul.f32.gmra.mxu0 %v1402
  %v1442 = vpop.f32.mrf.mxu0
  %v1443 = vadd.f32 %v1381, %v1442
  %1444 = vmatmul.f32.gmra.mxu0 %v1405
  %v1445 = vpop.f32.mrf.mxu0
  %v1446 = vadd.f32 %v1381, %v1445
  %1447 = vdwg.mxu0
  %vm1448 = vcmask 64512
  %1449 = vst.msk [vmem:[%s9] sm:$0xff] %vm1448, %v1425
  %1450 = vst.msk [vmem:[%s9 + $0x8] sm:$0xff] %vm1448, %v1428
  %1451 = vst.msk [vmem:[%s9 + $0x10] sm:$0xff] %vm1448, %v1431
  %1452 = vst.msk [vmem:[%s9 + $0x18] sm:$0xff] %vm1448, %v1434
  %1453 = vst.msk [vmem:[%s9 + $0x20] sm:$0xff] %vm1448, %v1437
  %1454 = vst.msk [vmem:[%s9 + $0x28] sm:$0xff] %vm1448, %v1440
  %1455 = vst.msk [vmem:[%s9 + $0x30] sm:$0xff] %vm1448, %v1443
  %1456 = vst.msk [vmem:[%s9 + $0x38] sm:$0xff] %vm1448, %v1446
  // Predicated region
  $region42: #{generator_forward.1} parent=0 // pred_check
    _
  $region43: #{generator_forward.1} parent=0 // pred_check_branch
    %1458 = sbr.rel (0) target = $region45
  $region44: #{generator_forward.1} parent=0 // pred_region
    _
  $region45: #{generator_forward.1} parent=0 // pred_fallthru
    _
  // Predicated region
  $region46: #{generator_forward.1} parent=0 // pred_check
    _
  $region47: #{generator_forward.1} parent=0 // pred_check_branch
    %1460 = sbr.rel (0) target = $region49
  $region48: #{generator_forward.1} parent=0 // pred_region
    _
  $region49: #{generator_forward.1} parent=0 // pred_fallthru
    _

</llo_original>
